<compile_context>
chip_gen: v7x
topology: tpu7x:2x2x1
jax: 0.10.0
libtpu: 0.0.40
codegen_flags: <defaults>
</compile_context>

<pallas_src>
import math

import jax
import jax.numpy as jnp
from jax.experimental import pallas as pl
from jax.experimental.pallas import tpu as pltpu


def fingerprint_embedding_kernel(
    x_t_ref,     # (D, S)        shared: in_states^T (obs dim on sublanes, states on lanes)
    scale_ref,   # (A, 1)        shared: action-space scaling (column -> broadcast over states)
    offset_ref,  # (A, 1)        shared: action-space offset
    w0_ref,      # (TB, H1, D)   batched policy-net layer-0 weight (PyTorch (out,in) layout)
    b0_ref,      # (TB, H1, 1)   batched layer-0 bias (column -> lane-broadcast over states)
    w1_ref,      # (TB, A, H1)   batched policy-net layer-1 weight
    b1_ref,      # (TB, A, 1)    batched layer-1 bias
    out_ref,     # (TB, A, S)    output, per-element transposed (wrapper undoes it)
):
    f32 = jnp.float32
    tb, h1, d = w0_ref.shape
    s = x_t_ref.shape[1]

    w0 = w0_ref[...]
    x_t = x_t_ref[...].astype(w0.dtype)

    # ---- Layer 0, flattened over the whole batch tile: one (TB*H1, D) @ (D, S) MXU matmul.
    # Row b*H1 + o of the result is hidden neuron o of batch element b; states live on lanes.
    # Reshapes below are layout-preserving because H1 is a multiple of 8 and the lane dim is kept.
    w0_flat = w0.reshape(tb * h1, d)
    h = jnp.dot(w0_flat, x_t, preferred_element_type=f32)            # (TB*H1, S), f32 accum
    h = h + b0_ref[...].reshape(tb * h1, 1)                          # bias, broadcast over states
    h = jnp.maximum(h, 0.0)                                          # ReLU (the single activation)
    h3 = h.reshape(tb, h1, s)                                        # (TB, H1, S), free reshape

    # ---- Layer 1: both operands are batch-varying -> batched (A, H1) @ (H1, S) matmul per element.
    w1 = w1_ref[...]
    y = jax.lax.dot_general(
        w1, h3.astype(w1.dtype),
        dimension_numbers=(((2,), (1,)), ((0,), (0,))),
        preferred_element_type=f32)                                  # (TB, A, S)
    y = y + b1_ref[...]                                              # bias, broadcast over states

    # ---- Action-space affine: fv * scaling + offset (epilogue kept in f32).
    y = y * scale_ref[...][None] + offset_ref[...][None]
    out_ref[...] = y.astype(out_ref.dtype)


def fingerprint_embedding_forward(in_states, scaling, offset, w0, b0, w1, b1,
                                  *, batch_tile=128, stream_dtype=None):
    """FingerprintEmbedding.forward.

    in_states: (S, D) learned input states (shared over the batch).
    scaling, offset: (A,) action-space affine.
    w0: (B, H1, D), b0: (B, H1), w1: (B, A, H1), b1: (B, A)  -- batched policy-net params.
    stream_dtype: optionally bf16 for the HBM-streamed weights (f32 accumulation kept).
    Returns (B, S*A).
    """
    B, H1, D = w0.shape
    A = w1.shape[1]
    S = in_states.shape[0]

    tb = max(1, min(batch_tile, B))
    b_pad = pl.cdiv(B, tb) * tb
    pad = b_pad - B
    if pad:
        w0 = jnp.pad(w0, ((0, pad), (0, 0), (0, 0)))
        b0 = jnp.pad(b0, ((0, pad), (0, 0)))
        w1 = jnp.pad(w1, ((0, pad), (0, 0), (0, 0)))
        b1 = jnp.pad(b1, ((0, pad), (0, 0)))

    w_dtype = jnp.float32 if stream_dtype is None else stream_dtype
    w0p = w0.astype(w_dtype)                      # the only large per-batch HBM traffic
    w1p = w1.astype(w_dtype)
    b0c = b0.astype(jnp.float32).reshape(b_pad, H1, 1)
    b1c = b1.astype(jnp.float32).reshape(b_pad, A, 1)

    x_t = jnp.asarray(in_states, jnp.float32).T            # (D, S)
    scale_col = jnp.asarray(scaling, jnp.float32).reshape(A, 1)
    off_col = jnp.asarray(offset, jnp.float32).reshape(A, 1)

    def shared(arr):
        nd = arr.ndim
        return pl.BlockSpec(arr.shape, lambda i, _nd=nd: (0,) * _nd)

    def batched(shape_tail):
        nz = len(shape_tail)
        return pl.BlockSpec((tb,) + shape_tail, lambda i, _nz=nz: (i,) + (0,) * _nz)

    flops = int(2 * b_pad * S * (H1 * D + A * H1) + 3 * b_pad * A * S)
    bytes_accessed = int(
        x_t.size * 4 + scale_col.size * 4 + off_col.size * 4
        + w0p.size * w0p.dtype.itemsize + w1p.size * w1p.dtype.itemsize
        + b0c.size * 4 + b1c.size * 4 + b_pad * A * S * 4)

    out3 = pl.pallas_call(
        fingerprint_embedding_kernel,
        out_shape=jax.ShapeDtypeStruct((b_pad, A, S), jnp.float32),
        grid=(b_pad // tb,),
        in_specs=[
            shared(x_t),
            shared(scale_col),
            shared(off_col),
            batched((H1, D)),
            batched((H1, 1)),
            batched((A, H1)),
            batched((A, 1)),
        ],
        out_specs=batched((A, S)),
        compiler_params=pltpu.CompilerParams(dimension_semantics=("parallel",)),
        cost_estimate=pl.CostEstimate(flops=flops, transcendentals=0,
                                      bytes_accessed=bytes_accessed),
    )(x_t, scale_col, off_col, w0p, b0c, w1p, b1c)

    out3 = out3[:B]                                        # drop batch padding
    # Undo the kernel's per-element (A, S) orientation: (B, A, S) -> (B, S, A) -> (B, S*A).
    return out3.transpose(0, 2, 1).reshape(B, S * A)


def reference_forward(in_states, scaling, offset, w0, b0, w1, b1):
    """Pure-JAX replication of FingerprintEmbedding.forward for verification."""
    B = w0.shape[0]
    fv = jnp.broadcast_to(in_states[None], (B,) + in_states.shape)      # (B, S, D)
    fv = fv @ jnp.swapaxes(w0, 1, 2) + b0[:, None, :]                    # layer 0
    fv = jax.nn.relu(fv)                                                 # single activation
    fv = fv @ jnp.swapaxes(w1, 1, 2) + b1[:, None, :]                    # layer 1 (no activation)
    return (fv * scaling + offset).reshape(B, -1)


if __name__ == "__main__":
    # Shapes implied by the chosen policy_network_example / spaces (see header).
    B, S, D, H1, A = 32, 4, 8, 16, 4

    key = jax.random.PRNGKey(0)
    k = jax.random.split(key, 5)

    # normalized_input=True -> in_states = randn(num_in_states, *obs_shape)
    in_states = jax.random.normal(k[0], (S, D), jnp.float32)

    # action_space Box(low=-2, high=2): scaling = (high-low)/2, offset = scaling + low
    low = -2.0 * jnp.ones((A,), jnp.float32)
    high = 2.0 * jnp.ones((A,), jnp.float32)
    scaling = (high - low) / 2.0
    offset = scaling + low

    def linear_params(kw, kb, fan_out, fan_in):
        bound = 1.0 / math.sqrt(fan_in)
        w = jax.random.uniform(kw, (B, fan_out, fan_in), jnp.float32, -bound, bound)
        b = jax.random.uniform(kb, (B, fan_out), jnp.float32, -bound, bound)
        return w, b

    w0, b0 = linear_params(k[1], k[2], H1, D)     # named_parameters['0.weight'/'0.bias']
    w1, b1 = linear_params(k[3], k[4], A, H1)     # named_parameters['2.weight'/'2.bias']

    ref = reference_forward(in_states, scaling, offset, w0, b0, w1, b1)

    # f32 path (exact): batch tile of 16 -> 2 grid steps (keeps both v7x TensorCores busy).
    out = fingerprint_embedding_forward(in_states, scaling, offset, w0, b0, w1, b1,
                                        batch_tile=16)
    out = jax.block_until_ready(out)
    assert out.shape == (B, S * A), out.shape
    assert jnp.allclose(out, ref, rtol=1e-5, atol=1e-5), (
        float(jnp.max(jnp.abs(out - ref))))

    # bf16-streamed weights (v6e/v7x HBM-traffic optimization), f32 accumulation.
    out_bf16 = fingerprint_embedding_forward(in_states, scaling, offset, w0, b0, w1, b1,
                                             batch_tile=16, stream_dtype=jnp.bfloat16)
    out_bf16 = jax.block_until_ready(out_bf16)
    assert jnp.allclose(out_bf16, ref, rtol=5e-2, atol=5e-2), (
        float(jnp.max(jnp.abs(out_bf16 - ref))))

    print("KERNEL_OK")
</pallas_src>

<mosaic_0001>
module attributes {stable_mosaic.version = 11 : i64} {
  func.func @fingerprint_embedding_kernel(%arg0: i32, %arg1: memref<8x4xf32, #tpu.memory_space<vmem>>, %arg2: memref<4x1xf32, #tpu.memory_space<vmem>>, %arg3: memref<4x1xf32, #tpu.memory_space<vmem>>, %arg4: memref<16x16x8xf32, #tpu.memory_space<vmem>>, %arg5: memref<16x16x1xf32, #tpu.memory_space<vmem>>, %arg6: memref<16x4x16xf32, #tpu.memory_space<vmem>>, %arg7: memref<16x4x1xf32, #tpu.memory_space<vmem>>, %arg8: memref<16x4x4xf32, #tpu.memory_space<vmem>>) attributes {dimension_semantics = [#tpu.dimension_semantics<parallel>], iteration_bounds = array<i64: 2>, scalar_prefetch = 0 : i64, scratch_operands = 0 : i64, tpu.core_type = #tpu.core_type<tc>, window_params = [{pipeline_mode = #tpu.pipeline_mode<synchronous>, transform_indices = @transform_0, window_bounds = array<i64: 8, 4>}, {pipeline_mode = #tpu.pipeline_mode<synchronous>, transform_indices = @transform_1, window_bounds = array<i64: 4, 1>}, {pipeline_mode = #tpu.pipeline_mode<synchronous>, transform_indices = @transform_2, window_bounds = array<i64: 4, 1>}, {transform_indices = @transform_3, window_bounds = array<i64: 16, 16, 8>}, {transform_indices = @transform_4, window_bounds = array<i64: 16, 16, 1>}, {transform_indices = @transform_5, window_bounds = array<i64: 16, 4, 16>}, {transform_indices = @transform_6, window_bounds = array<i64: 16, 4, 1>}, {transform_indices = @transform_7, window_bounds = array<i64: 16, 4, 4>}]} {
    %c0 = arith.constant 0 : index
    %c0_0 = arith.constant 0 : index
    %c0_1 = arith.constant 0 : index
    %0 = vector.load %arg4[%c0, %c0_0, %c0_1] : memref<16x16x8xf32, #tpu.memory_space<vmem>>, vector<16x16x8xf32>
    %c0_2 = arith.constant 0 : index
    %c0_3 = arith.constant 0 : index
    %1 = vector.load %arg1[%c0_2, %c0_3] : memref<8x4xf32, #tpu.memory_space<vmem>>, vector<8x4xf32>
    %2 = vector.shape_cast %0 : vector<16x16x8xf32> to vector<256x8xf32>
    %cst = arith.constant dense<0.000000e+00> : vector<256x4xf32>
    %3 = tpu.matmul %2, %1, %cst {dimension_numbers = #tpu.dot_dimension_numbers<[1], [0], [0], [1], [0, 0, 1, 1], [], []>} : vector<256x8xf32>, vector<8x4xf32>, vector<256x4xf32> -> vector<256x4xf32>
    %c0_4 = arith.constant 0 : index
    %c0_5 = arith.constant 0 : index
    %c0_6 = arith.constant 0 : index
    %4 = vector.load %arg5[%c0_4, %c0_5, %c0_6] : memref<16x16x1xf32, #tpu.memory_space<vmem>>, vector<16x16x1xf32>
    %5 = vector.shape_cast %4 : vector<16x16x1xf32> to vector<256x1xf32>
    %6 = vector.broadcast %5 : vector<256x1xf32> to vector<256x4xf32>
    %7 = arith.addf %3, %6 : vector<256x4xf32>
    %cst_7 = arith.constant 0.000000e+00 : f32
    %8 = vector.broadcast %cst_7 : f32 to vector<256x4xf32>
    %9 = arith.maximumf %7, %8 : vector<256x4xf32>
    %10 = vector.shape_cast %9 : vector<256x4xf32> to vector<16x16x4xf32>
    %c0_8 = arith.constant 0 : index
    %c0_9 = arith.constant 0 : index
    %c0_10 = arith.constant 0 : index
    %11 = vector.load %arg6[%c0_8, %c0_9, %c0_10] : memref<16x4x16xf32, #tpu.memory_space<vmem>>, vector<16x4x16xf32>
    %cst_11 = arith.constant dense<0.000000e+00> : vector<16x4x4xf32>
    %12 = tpu.matmul %11, %10, %cst_11 {dimension_numbers = #tpu.dot_dimension_numbers<[2], [1], [1], [2], [0, 0, 0, 1, 1, 2], [0], [0]>} : vector<16x4x16xf32>, vector<16x16x4xf32>, vector<16x4x4xf32> -> vector<16x4x4xf32>
    %c0_12 = arith.constant 0 : index
    %c0_13 = arith.constant 0 : index
    %c0_14 = arith.constant 0 : index
    %13 = vector.load %arg7[%c0_12, %c0_13, %c0_14] : memref<16x4x1xf32, #tpu.memory_space<vmem>>, vector<16x4x1xf32>
    %14 = vector.broadcast %13 : vector<16x4x1xf32> to vector<16x4x4xf32>
    %15 = arith.addf %12, %14 : vector<16x4x4xf32>
    %c0_15 = arith.constant 0 : index
    %c0_16 = arith.constant 0 : index
    %16 = vector.load %arg2[%c0_15, %c0_16] : memref<4x1xf32, #tpu.memory_space<vmem>>, vector<4x1xf32>
    %17 = vector.shape_cast %16 : vector<4x1xf32> to vector<1x4x1xf32>
    %18 = vector.broadcast %17 : vector<1x4x1xf32> to vector<16x4x4xf32>
    %19 = arith.mulf %15, %18 : vector<16x4x4xf32>
    %c0_17 = arith.constant 0 : index
    %c0_18 = arith.constant 0 : index
    %20 = vector.load %arg3[%c0_17, %c0_18] : memref<4x1xf32, #tpu.memory_space<vmem>>, vector<4x1xf32>
    %21 = vector.shape_cast %20 : vector<4x1xf32> to vector<1x4x1xf32>
    %22 = vector.broadcast %21 : vector<1x4x1xf32> to vector<16x4x4xf32>
    %23 = arith.addf %19, %22 : vector<16x4x4xf32>
    %c0_19 = arith.constant 0 : index
    %c0_20 = arith.constant 0 : index
    %c0_21 = arith.constant 0 : index
    %24 = vector.load %arg8[%c0_19, %c0_20, %c0_21] : memref<16x4x4xf32, #tpu.memory_space<vmem>>, vector<16x4x4xf32>
    tpu.vector_store %arg8[%c0_19, %c0_20, %c0_21], %23 {strides = array<i32>} : memref<16x4x4xf32, #tpu.memory_space<vmem>>, vector<16x4x4xf32>,
    return
  }
  func.func @transform_0(%arg0: i32) -> (i32, i32) {
    %c0_i32 = arith.constant 0 : i32
    %c0_i32_0 = arith.constant 0 : i32
    %c0_i32_1 = arith.constant 0 : i32
    return %c0_i32, %c0_i32_0 : i32, i32
  }
  func.func @transform_1(%arg0: i32) -> (i32, i32) {
    %c0_i32 = arith.constant 0 : i32
    %c0_i32_0 = arith.constant 0 : i32
    %c0_i32_1 = arith.constant 0 : i32
    return %c0_i32, %c0_i32_0 : i32, i32
  }
  func.func @transform_2(%arg0: i32) -> (i32, i32) {
    %c0_i32 = arith.constant 0 : i32
    %c0_i32_0 = arith.constant 0 : i32
    %c0_i32_1 = arith.constant 0 : i32
    return %c0_i32, %c0_i32_0 : i32, i32
  }
  func.func @transform_3(%arg0: i32) -> (i32, i32, i32) {
    %c0_i32 = arith.constant 0 : i32
    %c0_i32_0 = arith.constant 0 : i32
    %c0_i32_1 = arith.constant 0 : i32
    return %arg0, %c0_i32, %c0_i32_0 : i32, i32, i32
  }
  func.func @transform_4(%arg0: i32) -> (i32, i32, i32) {
    %c0_i32 = arith.constant 0 : i32
    %c0_i32_0 = arith.constant 0 : i32
    %c0_i32_1 = arith.constant 0 : i32
    return %arg0, %c0_i32, %c0_i32_0 : i32, i32, i32
  }
  func.func @transform_5(%arg0: i32) -> (i32, i32, i32) {
    %c0_i32 = arith.constant 0 : i32
    %c0_i32_0 = arith.constant 0 : i32
    %c0_i32_1 = arith.constant 0 : i32
    return %arg0, %c0_i32, %c0_i32_0 : i32, i32, i32
  }
  func.func @transform_6(%arg0: i32) -> (i32, i32, i32) {
    %c0_i32 = arith.constant 0 : i32
    %c0_i32_0 = arith.constant 0 : i32
    %c0_i32_1 = arith.constant 0 : i32
    return %arg0, %c0_i32, %c0_i32_0 : i32, i32, i32
  }
  func.func @transform_7(%arg0: i32) -> (i32, i32, i32) {
    %c0_i32 = arith.constant 0 : i32
    %c0_i32_0 = arith.constant 0 : i32
    %c0_i32_1 = arith.constant 0 : i32
    return %arg0, %c0_i32, %c0_i32_0 : i32, i32, i32
  }
}

</mosaic_0001>

<llo_original>
// kernel: tpu_custom_call.1
$region0: #{tpu_custom_call.1}
  #allocation0 [shape = 'u32[]', space=smem, size = 0x4, offset = 0x4, fixed_abs, tag = 'smem constant byte address 0x4 - core index']
  #allocation1 [shape = 'u32[144,128]{1,0:T(1,128)}', space=vmem, size = 0x12000, scoped, tag = 'internal scratch']
  %s0 = inlined_call_operand.vmem [shape: f32[8,4], index: 0, kind: input, shape index: {}]
  %s1 = inlined_call_operand.vmem [shape: f32[4,1], index: 1, kind: input, shape index: {}]
  %s2 = inlined_call_operand.vmem [shape: f32[4,1], index: 2, kind: input, shape index: {}]
  %s3 = inlined_call_operand.vmem [shape: f32[32,16,8], index: 3, kind: input, shape index: {}]
  %s4 = inlined_call_operand.vmem [shape: f32[32,16,1], index: 4, kind: input, shape index: {}]
  %s5 = inlined_call_operand.vmem [shape: f32[32,4,16], index: 5, kind: input, shape index: {}]
  %s6 = inlined_call_operand.vmem [shape: f32[32,4,1], index: 6, kind: input, shape index: {}]
  %s7 = inlined_call_operand.vmem [shape: f32[32,4,4], index: 7, kind: output, shape index: {}]
  %s8 = sld [smem:[#allocation0]]
  $region61: #{tpu_custom_call.1} parent=0
    _
  %s10 = ssub.s32 1, %s8
  %s11 = scalar_select 0, %s10, %s8
  loop: start=0, step=1, limit=4
  $region2: #{tpu_custom_call.1} parent=0 // loop_pre_header
    _
  $region3: #{tpu_custom_call.1} parent=0 // loop_header
    %s13 = sphi 0, %s17
    %p14 = scmp.ge.s32.totalorder %s13, 4
    %s21 = sphi 0, %s21
    %s23 = sphi 0, %s21
    %s24 = sphi 0, %s23
    %s38 = sphi 0, %s24
    %s42 = sphi 0, %s42
    %s44 = sphi 0, %s42
    %s45 = sphi 0, %s44
    %s59 = sphi 0, %s45
    %s63 = sphi 0, %s63
    %s65 = sphi 0, %s63
    %s66 = sphi 0, %s65
    %s80 = sphi 0, %s66
    %s86 = sphi 0, %s88
    %s89 = sphi 0, %s86
    %s90 = sphi 0, %s89
    %s106 = sphi 0, %s90
    %s112 = sphi 0, %s114
    %s115 = sphi 0, %s112
    %s116 = sphi 0, %s115
    %s132 = sphi 0, %s116
    %s138 = sphi 0, %s140
    %s141 = sphi 0, %s138
    %s142 = sphi 0, %s141
    %s158 = sphi 0, %s142
    %s164 = sphi 0, %s166
    %s167 = sphi 0, %s164
    %s168 = sphi 0, %s167
    %s184 = sphi 0, %s168
    %s190 = sphi 0, %s192
    %s193 = sphi 0, %s190
    %s194 = sphi 0, %s193
    %s210 = sphi 0, %s194
  $region4: #{tpu_custom_call.1} parent=0 // loop_header_branch
    %16 = sbr.rel (%p14) target = $region8
  $region5: #{tpu_custom_call.1} parent=0 // loop_body
    %s18 = ssub.s32 %s13, 1
    %s19 = ssub.s32 %s13, 2
    %s20 = sadd.s32 %s13, 1
    %s22 = sadd.s32 %s21, 1
    %p25 = scmp.eq.s32.totalorder %s13, 1
    %p26 = scmp.ne.s32.totalorder %s21, %s23
    %p27 = scmp.eq.s32.totalorder %s13, 0
    %p28 = por %p26, %p27
    %p29 = scmp.ne.s32.totalorder %s21, %s23
    %p30 = scmp.eq.s32.totalorder %s18, 1
    %p31 = por %p29, %p30
    %p32 = scmp.ne.s32.totalorder %s23, %s24
    %p33 = scmp.eq.s32.totalorder %s18, 0
    %p34 = por %p32, %p33
    %p35 = scmp.ne.s32.totalorder %s23, %s24
    %p36 = scmp.eq.s32.totalorder %s19, 1
    %p37 = por %p35, %p36
    %p39 = scmp.ne.s32.totalorder %s24, %s38
    %p40 = scmp.eq.s32.totalorder %s19, 0
    %p41 = por %p39, %p40
    %s43 = sadd.s32 %s42, 1
    %p46 = scmp.eq.s32.totalorder %s13, 1
    %p47 = scmp.ne.s32.totalorder %s42, %s44
    %p48 = scmp.eq.s32.totalorder %s13, 0
    %p49 = por %p47, %p48
    %p50 = scmp.ne.s32.totalorder %s42, %s44
    %p51 = scmp.eq.s32.totalorder %s18, 1
    %p52 = por %p50, %p51
    %p53 = scmp.ne.s32.totalorder %s44, %s45
    %p54 = scmp.eq.s32.totalorder %s18, 0
    %p55 = por %p53, %p54
    %p56 = scmp.ne.s32.totalorder %s44, %s45
    %p57 = scmp.eq.s32.totalorder %s19, 1
    %p58 = por %p56, %p57
    %p60 = scmp.ne.s32.totalorder %s45, %s59
    %p61 = scmp.eq.s32.totalorder %s19, 0
    %p62 = por %p60, %p61
    %s64 = sadd.s32 %s63, 1
    %p67 = scmp.eq.s32.totalorder %s13, 1
    %p68 = scmp.ne.s32.totalorder %s63, %s65
    %p69 = scmp.eq.s32.totalorder %s13, 0
    %p70 = por %p68, %p69
    %p71 = scmp.ne.s32.totalorder %s63, %s65
    %p72 = scmp.eq.s32.totalorder %s18, 1
    %p73 = por %p71, %p72
    %p74 = scmp.ne.s32.totalorder %s65, %s66
    %p75 = scmp.eq.s32.totalorder %s18, 0
    %p76 = por %p74, %p75
    %p77 = scmp.ne.s32.totalorder %s65, %s66
    %p78 = scmp.eq.s32.totalorder %s19, 1
    %p79 = por %p77, %p78
    %p81 = scmp.ne.s32.totalorder %s66, %s80
    %p82 = scmp.eq.s32.totalorder %s19, 0
    %p83 = por %p81, %p82
    %s84 = ssub.s32 %s13, %s20
    %p85 = scmp.eq.s32.totalorder %s84, 0
    %s87 = sadd.s32 %s86, 1
    %s88 = scalar_select %p85, %s86, %s87
    %p91 = pneg %p85
    %p92 = scmp.eq.s32.totalorder %s13, 1
    %p93 = por %p91, %p92
    %p94 = scmp.ne.s32.totalorder %s86, %s89
    %p95 = scmp.eq.s32.totalorder %s13, 0
    %p96 = por %p94, %p95
    %p97 = scmp.ne.s32.totalorder %s86, %s89
    %p98 = scmp.eq.s32.totalorder %s18, 1
    %p99 = por %p97, %p98
    %p100 = scmp.ne.s32.totalorder %s89, %s90
    %p101 = scmp.eq.s32.totalorder %s18, 0
    %p102 = por %p100, %p101
    %p103 = scmp.ne.s32.totalorder %s89, %s90
    %p104 = scmp.eq.s32.totalorder %s19, 1
    %p105 = por %p103, %p104
    %p107 = scmp.ne.s32.totalorder %s90, %s106
    %p108 = scmp.eq.s32.totalorder %s19, 0
    %p109 = por %p107, %p108
    %s110 = ssub.s32 %s13, %s20
    %p111 = scmp.eq.s32.totalorder %s110, 0
    %s113 = sadd.s32 %s112, 1
    %s114 = scalar_select %p111, %s112, %s113
    %p117 = pneg %p111
    %p118 = scmp.eq.s32.totalorder %s13, 1
    %p119 = por %p117, %p118
    %p120 = scmp.ne.s32.totalorder %s112, %s115
    %p121 = scmp.eq.s32.totalorder %s13, 0
    %p122 = por %p120, %p121
    %p123 = scmp.ne.s32.totalorder %s112, %s115
    %p124 = scmp.eq.s32.totalorder %s18, 1
    %p125 = por %p123, %p124
    %p126 = scmp.ne.s32.totalorder %s115, %s116
    %p127 = scmp.eq.s32.totalorder %s18, 0
    %p128 = por %p126, %p127
    %p129 = scmp.ne.s32.totalorder %s115, %s116
    %p130 = scmp.eq.s32.totalorder %s19, 1
    %p131 = por %p129, %p130
    %p133 = scmp.ne.s32.totalorder %s116, %s132
    %p134 = scmp.eq.s32.totalorder %s19, 0
    %p135 = por %p133, %p134
    %s136 = ssub.s32 %s13, %s20
    %p137 = scmp.eq.s32.totalorder %s136, 0
    %s139 = sadd.s32 %s138, 1
    %s140 = scalar_select %p137, %s138, %s139
    %p143 = pneg %p137
    %p144 = scmp.eq.s32.totalorder %s13, 1
    %p145 = por %p143, %p144
    %p146 = scmp.ne.s32.totalorder %s138, %s141
    %p147 = scmp.eq.s32.totalorder %s13, 0
    %p148 = por %p146, %p147
    %p149 = scmp.ne.s32.totalorder %s138, %s141
    %p150 = scmp.eq.s32.totalorder %s18, 1
    %p151 = por %p149, %p150
    %p152 = scmp.ne.s32.totalorder %s141, %s142
    %p153 = scmp.eq.s32.totalorder %s18, 0
    %p154 = por %p152, %p153
    %p155 = scmp.ne.s32.totalorder %s141, %s142
    %p156 = scmp.eq.s32.totalorder %s19, 1
    %p157 = por %p155, %p156
    %p159 = scmp.ne.s32.totalorder %s142, %s158
    %p160 = scmp.eq.s32.totalorder %s19, 0
    %p161 = por %p159, %p160
    %s162 = ssub.s32 %s13, %s20
    %p163 = scmp.eq.s32.totalorder %s162, 0
    %s165 = sadd.s32 %s164, 1
    %s166 = scalar_select %p163, %s164, %s165
    %p169 = pneg %p163
    %p170 = scmp.eq.s32.totalorder %s13, 1
    %p171 = por %p169, %p170
    %p172 = scmp.ne.s32.totalorder %s164, %s167
    %p173 = scmp.eq.s32.totalorder %s13, 0
    %p174 = por %p172, %p173
    %p175 = scmp.ne.s32.totalorder %s164, %s167
    %p176 = scmp.eq.s32.totalorder %s18, 1
    %p177 = por %p175, %p176
    %p178 = scmp.ne.s32.totalorder %s167, %s168
    %p179 = scmp.eq.s32.totalorder %s18, 0
    %p180 = por %p178, %p179
    %p181 = scmp.ne.s32.totalorder %s167, %s168
    %p182 = scmp.eq.s32.totalorder %s19, 1
    %p183 = por %p181, %p182
    %p185 = scmp.ne.s32.totalorder %s168, %s184
    %p186 = scmp.eq.s32.totalorder %s19, 0
    %p187 = por %p185, %p186
    %s188 = ssub.s32 %s13, %s20
    %p189 = scmp.eq.s32.totalorder %s188, 0
    %s191 = sadd.s32 %s190, 1
    %s192 = scalar_select %p189, %s190, %s191
    %p195 = pneg %p189
    %p196 = scmp.eq.s32.totalorder %s13, 1
    %p197 = por %p195, %p196
    %p198 = scmp.ne.s32.totalorder %s190, %s193
    %p199 = scmp.eq.s32.totalorder %s13, 0
    %p200 = por %p198, %p199
    %p201 = scmp.ne.s32.totalorder %s190, %s193
    %p202 = scmp.eq.s32.totalorder %s18, 1
    %p203 = por %p201, %p202
    %p204 = scmp.ne.s32.totalorder %s193, %s194
    %p205 = scmp.eq.s32.totalorder %s18, 0
    %p206 = por %p204, %p205
    %p207 = scmp.ne.s32.totalorder %s193, %s194
    %p208 = scmp.eq.s32.totalorder %s19, 1
    %p209 = por %p207, %p208
    %p211 = scmp.ne.s32.totalorder %s194, %s210
    %p212 = scmp.eq.s32.totalorder %s19, 0
    %p213 = por %p211, %p212
    %p214 = scmp.le.s32.totalorder 1, %s13
    %p215 = scmp.lt.s32.totalorder %s13, 3
    %p216 = pnand %p214, %p215
    %p217 = pneg %p216
    // Predicated region
    $region9: #{tpu_custom_call.1} parent=5 // pred_check
      _
    $region10: #{tpu_custom_call.1} parent=5 // pred_check_branch
      %219 = sbr.rel (%p216) target = $region12
    $region11: #{tpu_custom_call.1} parent=5 // pred_region
      %s220 = ssub.s32 %s13, 1
      // Predicated region
      $region13: #{tpu_custom_call.1} parent=11 // pred_check
        %p221 = pneg %p34
      $region14: #{tpu_custom_call.1} parent=11 // pred_check_branch
        %223 = sbr.rel (%p221) target = $region16
      $region15: #{tpu_custom_call.1} parent=11 // pred_region
        _
      $region16: #{tpu_custom_call.1} parent=11 // pred_fallthru
        _
      // Predicated region
      $region17: #{tpu_custom_call.1} parent=11 // pred_check
        %p224 = pneg %p55
      $region18: #{tpu_custom_call.1} parent=11 // pred_check_branch
        %226 = sbr.rel (%p224) target = $region20
      $region19: #{tpu_custom_call.1} parent=11 // pred_region
        _
      $region20: #{tpu_custom_call.1} parent=11 // pred_fallthru
        _
      // Predicated region
      $region21: #{tpu_custom_call.1} parent=11 // pred_check
        %p227 = pneg %p76
      $region22: #{tpu_custom_call.1} parent=11 // pred_check_branch
        %229 = sbr.rel (%p227) target = $region24
      $region23: #{tpu_custom_call.1} parent=11 // pred_region
        _
      $region24: #{tpu_custom_call.1} parent=11 // pred_fallthru
        _
    $region12: #{tpu_custom_call.1} parent=5 // pred_fallthru
      _
    %p230 = scmp.lt.s32.totalorder %s13, 2
    // Predicated region
    $region25: #{tpu_custom_call.1} parent=5 // pred_check
      %p231 = pneg %p230
    $region26: #{tpu_custom_call.1} parent=5 // pred_check_branch
      %233 = sbr.rel (%p231) target = $region28
    $region27: #{tpu_custom_call.1} parent=5 // pred_region
      // Predicated region
      $region29: #{tpu_custom_call.1} parent=27 // pred_check
        %p234 = pneg %p96
      $region30: #{tpu_custom_call.1} parent=27 // pred_check_branch
        %236 = sbr.rel (%p234) target = $region32
      $region31: #{tpu_custom_call.1} parent=27 // pred_region
        %s237 = smul.u32 16, %s13
        %p238 = scmp.lt.s32.totalorder %s237, 31
        %s239 = scalar_select %p238, %s237, 31
        %s240 = smul.addr %s239, 2
        %s241 = smul.addr %s240, 8
        %s242 = scalar_lea.vmem %s3, %s241
        %s243 = smul.u32 16, %s13
      $region32: #{tpu_custom_call.1} parent=27 // pred_fallthru
        _
      // Predicated region
      $region33: #{tpu_custom_call.1} parent=27 // pred_check
        %p244 = pneg %p122
      $region34: #{tpu_custom_call.1} parent=27 // pred_check_branch
        %246 = sbr.rel (%p244) target = $region36
      $region35: #{tpu_custom_call.1} parent=27 // pred_region
        %s247 = smul.u32 16, %s13
        %p248 = scmp.lt.s32.totalorder %s247, 31
        %s249 = scalar_select %p248, %s247, 31
        %s250 = smul.addr %s249, 2
        %s251 = smul.addr %s250, 8
        %s252 = scalar_lea.vmem %s4, %s251
        %s253 = smul.u32 16, %s13
      $region36: #{tpu_custom_call.1} parent=27 // pred_fallthru
        _
      // Predicated region
      $region37: #{tpu_custom_call.1} parent=27 // pred_check
        %p254 = pneg %p148
      $region38: #{tpu_custom_call.1} parent=27 // pred_check_branch
        %256 = sbr.rel (%p254) target = $region40
      $region39: #{tpu_custom_call.1} parent=27 // pred_region
        %s257 = smul.u32 16, %s13
        %p258 = scmp.lt.s32.totalorder %s257, 31
        %s259 = scalar_select %p258, %s257, 31
        %s260 = smul.addr %s259, 4
        %s261 = scalar_lea.vmem %s5, %s260
        %s262 = smul.u32 16, %s13
      $region40: #{tpu_custom_call.1} parent=27 // pred_fallthru
        _
      // Predicated region
      $region41: #{tpu_custom_call.1} parent=27 // pred_check
        %p263 = pneg %p174
      $region42: #{tpu_custom_call.1} parent=27 // pred_check_branch
        %265 = sbr.rel (%p263) target = $region44
      $region43: #{tpu_custom_call.1} parent=27 // pred_region
        %s266 = smul.u32 16, %s13
        %p267 = scmp.lt.s32.totalorder %s266, 31
        %s268 = scalar_select %p267, %s266, 31
        %s269 = smul.addr %s268, 4
        %s270 = scalar_lea.vmem %s6, %s269
        %s271 = smul.u32 16, %s13
      $region44: #{tpu_custom_call.1} parent=27 // pred_fallthru
        _
    $region28: #{tpu_custom_call.1} parent=5 // pred_fallthru
      _
    %p272 = scmp.le.s32.totalorder 1, %s13
    %p273 = scmp.lt.s32.totalorder %s13, 3
    %p274 = pnand %p272, %p273
    %p275 = pneg %p274
    // Predicated region
    $region45: #{tpu_custom_call.1} parent=5 // pred_check
      _
    $region46: #{tpu_custom_call.1} parent=5 // pred_check_branch
      %277 = sbr.rel (%p274) target = $region48
    $region47: #{tpu_custom_call.1} parent=5 // pred_region
      %s278 = ssub.s32 %s13, 1
      %p279 = pneg %p34
      %p280 = pneg %p31
      %p281 = pneg %p55
      %p282 = pneg %p52
      %p283 = pneg %p76
      %p284 = pneg %p73
      %s285 = smul.u32 16, %s18
      %p286 = scmp.lt.s32.totalorder %s285, 31
      %s287 = scalar_select %p286, %s285, 31
      %s288 = smul.addr %s287, 2
      %s289 = smul.addr %s288, 8
      %s290 = scalar_lea.vmem %s3, %s289
      %p291 = pneg %p102
      %p292 = pneg %p99
      %s293 = smul.u32 16, %s18
      %p294 = scmp.lt.s32.totalorder %s293, 31
      %s295 = scalar_select %p294, %s293, 31
      %s296 = smul.addr %s295, 2
      %s297 = smul.addr %s296, 8
      %s298 = scalar_lea.vmem %s4, %s297
      %p299 = pneg %p128
      %p300 = pneg %p125
      %s301 = smul.u32 16, %s18
      %p302 = scmp.lt.s32.totalorder %s301, 31
      %s303 = scalar_select %p302, %s301, 31
      %s304 = smul.addr %s303, 4
      %s305 = scalar_lea.vmem %s5, %s304
      %p306 = pneg %p154
      %p307 = pneg %p151
      %s308 = smul.u32 16, %s18
      %p309 = scmp.lt.s32.totalorder %s308, 31
      %s310 = scalar_select %p309, %s308, 31
      %s311 = smul.addr %s310, 4
      %s312 = scalar_lea.vmem %s6, %s311
      %p313 = pneg %p180
      %p314 = pneg %p177
      %p315 = pneg %p206
      %p316 = pneg %p203
      %s317 = smul.u32 16, %s18
      %p318 = scmp.lt.s32.totalorder %s317, 31
      %s319 = scalar_select %p318, %s317, 31
      %s320 = smul.addr %s319, 4
      %s321 = scalar_lea.vmem %s7, %s320
      %s322 = smul.u32 16, %s18
      %p323 = scmp.lt.s32.totalorder %s322, 31
      %s324 = scalar_select %p323, %s322, 31
      %s325 = smul.addr %s324, 2
      %s326 = smul.addr %s325, 8
      %s327 = scalar_lea.vmem %s3, %s326
      %s328 = smul.u32 16, %s18
      %s329 = smul.u32 16, %s18
      %p330 = scmp.lt.s32.totalorder %s329, 31
      %s331 = scalar_select %p330, %s329, 31
      %s332 = smul.addr %s331, 2
      %s333 = smul.addr %s332, 8
      %s334 = scalar_lea.vmem %s4, %s333
      %s335 = smul.u32 16, %s18
      %s336 = smul.u32 16, %s18
      %p337 = scmp.lt.s32.totalorder %s336, 31
      %s338 = scalar_select %p337, %s336, 31
      %s339 = smul.addr %s338, 4
      %s340 = scalar_lea.vmem %s5, %s339
      %s341 = smul.u32 16, %s18
      %s342 = smul.u32 16, %s18
      %p343 = scmp.lt.s32.totalorder %s342, 31
      %s344 = scalar_select %p343, %s342, 31
      %s345 = smul.addr %s344, 4
      %s346 = scalar_lea.vmem %s6, %s345
      %s347 = smul.u32 16, %s18
      %s348 = smul.u32 16, %s18
      %p349 = scmp.lt.s32.totalorder %s348, 31
      %s350 = scalar_select %p349, %s348, 31
      %s351 = smul.addr %s350, 4
      %s352 = scalar_lea.vmem %s7, %s351
      %s353 = smul.u32 16, %s18
      %v354 = vld [vmem:[%s327] sm:$0xff]
      %v355 = vld [vmem:[%s327 + $0x8] sm:$0xff]
      %v356 = vld [vmem:[%s327 + $0x10] sm:$0xff]
      %v357 = vld [vmem:[%s327 + $0x18] sm:$0xff]
      %v358 = vld [vmem:[%s327 + $0x20] sm:$0xff]
      %v359 = vld [vmem:[%s327 + $0x28] sm:$0xff]
      %v360 = vld [vmem:[%s327 + $0x30] sm:$0xff]
      %v361 = vld [vmem:[%s327 + $0x38] sm:$0xff]
      %v362 = vld [vmem:[%s327 + $0x40] sm:$0xff]
      %v363 = vld [vmem:[%s327 + $0x48] sm:$0xff]
      %v364 = vld [vmem:[%s327 + $0x50] sm:$0xff]
      %v365 = vld [vmem:[%s327 + $0x58] sm:$0xff]
      %v366 = vld [vmem:[%s327 + $0x60] sm:$0xff]
      %v367 = vld [vmem:[%s327 + $0x68] sm:$0xff]
      %v368 = vld [vmem:[%s327 + $0x70] sm:$0xff]
      %v369 = vld [vmem:[%s327 + $0x78] sm:$0xff]
      %v370 = vld [vmem:[%s327 + $0x80] sm:$0xff]
      %v371 = vld [vmem:[%s327 + $0x88] sm:$0xff]
      %v372 = vld [vmem:[%s327 + $0x90] sm:$0xff]
      %v373 = vld [vmem:[%s327 + $0x98] sm:$0xff]
      %v374 = vld [vmem:[%s327 + $0xa0] sm:$0xff]
      %v375 = vld [vmem:[%s327 + $0xa8] sm:$0xff]
      %v376 = vld [vmem:[%s327 + $0xb0] sm:$0xff]
      %v377 = vld [vmem:[%s327 + $0xb8] sm:$0xff]
      %v378 = vld [vmem:[%s327 + $0xc0] sm:$0xff]
      %v379 = vld [vmem:[%s327 + $0xc8] sm:$0xff]
      %v380 = vld [vmem:[%s327 + $0xd0] sm:$0xff]
      %v381 = vld [vmem:[%s327 + $0xd8] sm:$0xff]
      %v382 = vld [vmem:[%s327 + $0xe0] sm:$0xff]
      %v383 = vld [vmem:[%s327 + $0xe8] sm:$0xff]
      %v384 = vld [vmem:[%s327 + $0xf0] sm:$0xff]
      %v385 = vld [vmem:[%s327 + $0xf8] sm:$0xff]
      %v386 = vld [vmem:[%s0] sm:$0xff]
      %v387 = vld [vmem:[%s334] sm:$0xff]
      %v388 = vld [vmem:[%s334 + $0x8] sm:$0xff]
      %v389 = vld [vmem:[%s334 + $0x10] sm:$0xff]
      %v390 = vld [vmem:[%s334 + $0x18] sm:$0xff]
      %v391 = vld [vmem:[%s334 + $0x20] sm:$0xff]
      %v392 = vld [vmem:[%s334 + $0x28] sm:$0xff]
      %v393 = vld [vmem:[%s334 + $0x30] sm:$0xff]
      %v394 = vld [vmem:[%s334 + $0x38] sm:$0xff]
      %v395 = vld [vmem:[%s334 + $0x40] sm:$0xff]
      %v396 = vld [vmem:[%s334 + $0x48] sm:$0xff]
      %v397 = vld [vmem:[%s334 + $0x50] sm:$0xff]
      %v398 = vld [vmem:[%s334 + $0x58] sm:$0xff]
      %v399 = vld [vmem:[%s334 + $0x60] sm:$0xff]
      %v400 = vld [vmem:[%s334 + $0x68] sm:$0xff]
      %v401 = vld [vmem:[%s334 + $0x70] sm:$0xff]
      %v402 = vld [vmem:[%s334 + $0x78] sm:$0xff]
      %v403 = vld [vmem:[%s334 + $0x80] sm:$0xff]
      %v404 = vld [vmem:[%s334 + $0x88] sm:$0xff]
      %v405 = vld [vmem:[%s334 + $0x90] sm:$0xff]
      %v406 = vld [vmem:[%s334 + $0x98] sm:$0xff]
      %v407 = vld [vmem:[%s334 + $0xa0] sm:$0xff]
      %v408 = vld [vmem:[%s334 + $0xa8] sm:$0xff]
      %v409 = vld [vmem:[%s334 + $0xb0] sm:$0xff]
      %v410 = vld [vmem:[%s334 + $0xb8] sm:$0xff]
      %v411 = vld [vmem:[%s334 + $0xc0] sm:$0xff]
      %v412 = vld [vmem:[%s334 + $0xc8] sm:$0xff]
      %v413 = vld [vmem:[%s334 + $0xd0] sm:$0xff]
      %v414 = vld [vmem:[%s334 + $0xd8] sm:$0xff]
      %v415 = vld [vmem:[%s334 + $0xe0] sm:$0xff]
      %v416 = vld [vmem:[%s334 + $0xe8] sm:$0xff]
      %v417 = vld [vmem:[%s334 + $0xf0] sm:$0xff]
      %v418 = vld [vmem:[%s334 + $0xf8] sm:$0xff]
      %420 = vset.pattern.permute.xlu0 0
      %421 = vperm.xlu0 %420, %v387
      %v422 = vpop.permute.xlu0 %421
      %425 = vset.pattern.permute.xlu0 0
      %426 = vperm.xlu0 %425, %v388
      %v427 = vpop.permute.xlu0 %426
      %430 = vset.pattern.permute.xlu0 0
      %431 = vperm.xlu0 %430, %v389
      %v432 = vpop.permute.xlu0 %431
      %435 = vset.pattern.permute.xlu0 0
      %436 = vperm.xlu0 %435, %v390
      %v437 = vpop.permute.xlu0 %436
      %440 = vset.pattern.permute.xlu0 0
      %441 = vperm.xlu0 %440, %v391
      %v442 = vpop.permute.xlu0 %441
      %445 = vset.pattern.permute.xlu0 0
      %446 = vperm.xlu0 %445, %v392
      %v447 = vpop.permute.xlu0 %446
      %450 = vset.pattern.permute.xlu0 0
      %451 = vperm.xlu0 %450, %v393
      %v452 = vpop.permute.xlu0 %451
      %455 = vset.pattern.permute.xlu0 0
      %456 = vperm.xlu0 %455, %v394
      %v457 = vpop.permute.xlu0 %456
      %460 = vset.pattern.permute.xlu0 0
      %461 = vperm.xlu0 %460, %v395
      %v462 = vpop.permute.xlu0 %461
      %465 = vset.pattern.permute.xlu0 0
      %466 = vperm.xlu0 %465, %v396
      %v467 = vpop.permute.xlu0 %466
      %470 = vset.pattern.permute.xlu0 0
      %471 = vperm.xlu0 %470, %v397
      %v472 = vpop.permute.xlu0 %471
      %475 = vset.pattern.permute.xlu0 0
      %476 = vperm.xlu0 %475, %v398
      %v477 = vpop.permute.xlu0 %476
      %480 = vset.pattern.permute.xlu0 0
      %481 = vperm.xlu0 %480, %v399
      %v482 = vpop.permute.xlu0 %481
      %485 = vset.pattern.permute.xlu0 0
      %486 = vperm.xlu0 %485, %v400
      %v487 = vpop.permute.xlu0 %486
      %490 = vset.pattern.permute.xlu0 0
      %491 = vperm.xlu0 %490, %v401
      %v492 = vpop.permute.xlu0 %491
      %495 = vset.pattern.permute.xlu0 0
      %496 = vperm.xlu0 %495, %v402
      %v497 = vpop.permute.xlu0 %496
      %500 = vset.pattern.permute.xlu0 0
      %501 = vperm.xlu0 %500, %v403
      %v502 = vpop.permute.xlu0 %501
      %505 = vset.pattern.permute.xlu0 0
      %506 = vperm.xlu0 %505, %v404
      %v507 = vpop.permute.xlu0 %506
      %510 = vset.pattern.permute.xlu0 0
      %511 = vperm.xlu0 %510, %v405
      %v512 = vpop.permute.xlu0 %511
      %515 = vset.pattern.permute.xlu0 0
      %516 = vperm.xlu0 %515, %v406
      %v517 = vpop.permute.xlu0 %516
      %520 = vset.pattern.permute.xlu0 0
      %521 = vperm.xlu0 %520, %v407
      %v522 = vpop.permute.xlu0 %521
      %525 = vset.pattern.permute.xlu0 0
      %526 = vperm.xlu0 %525, %v408
      %v527 = vpop.permute.xlu0 %526
      %530 = vset.pattern.permute.xlu0 0
      %531 = vperm.xlu0 %530, %v409
      %v532 = vpop.permute.xlu0 %531
      %535 = vset.pattern.permute.xlu0 0
      %536 = vperm.xlu0 %535, %v410
      %v537 = vpop.permute.xlu0 %536
      %540 = vset.pattern.permute.xlu0 0
      %541 = vperm.xlu0 %540, %v411
      %v542 = vpop.permute.xlu0 %541
      %545 = vset.pattern.permute.xlu0 0
      %546 = vperm.xlu0 %545, %v412
      %v547 = vpop.permute.xlu0 %546
      %550 = vset.pattern.permute.xlu0 0
      %551 = vperm.xlu0 %550, %v413
      %v552 = vpop.permute.xlu0 %551
      %555 = vset.pattern.permute.xlu0 0
      %556 = vperm.xlu0 %555, %v414
      %v557 = vpop.permute.xlu0 %556
      %560 = vset.pattern.permute.xlu0 0
      %561 = vperm.xlu0 %560, %v415
      %v562 = vpop.permute.xlu0 %561
      %565 = vset.pattern.permute.xlu0 0
      %566 = vperm.xlu0 %565, %v416
      %v567 = vpop.permute.xlu0 %566
      %570 = vset.pattern.permute.xlu0 0
      %571 = vperm.xlu0 %570, %v417
      %v572 = vpop.permute.xlu0 %571
      %575 = vset.pattern.permute.xlu0 0
      %576 = vperm.xlu0 %575, %v418
      %v577 = vpop.permute.xlu0 %576
      %vm579 = vcmask 64512
      %v581 = vsel %vm579, %v354, 0
      %v584 = vsel %vm579, %v355, 0
      %v587 = vsel %vm579, %v356, 0
      %v590 = vsel %vm579, %v357, 0
      %v593 = vsel %vm579, %v358, 0
      %v596 = vsel %vm579, %v359, 0
      %v599 = vsel %vm579, %v360, 0
      %v602 = vsel %vm579, %v361, 0
      %v605 = vsel %vm579, %v362, 0
      %v608 = vsel %vm579, %v363, 0
      %v611 = vsel %vm579, %v364, 0
      %v614 = vsel %vm579, %v365, 0
      %v617 = vsel %vm579, %v366, 0
      %v620 = vsel %vm579, %v367, 0
      %v623 = vsel %vm579, %v368, 0
      %v626 = vsel %vm579, %v369, 0
      %v629 = vsel %vm579, %v370, 0
      %v632 = vsel %vm579, %v371, 0
      %v635 = vsel %vm579, %v372, 0
      %v638 = vsel %vm579, %v373, 0
      %v641 = vsel %vm579, %v374, 0
      %v644 = vsel %vm579, %v375, 0
      %v647 = vsel %vm579, %v376, 0
      %v650 = vsel %vm579, %v377, 0
      %v653 = vsel %vm579, %v378, 0
      %v656 = vsel %vm579, %v379, 0
      %v659 = vsel %vm579, %v380, 0
      %v662 = vsel %vm579, %v381, 0
      %v665 = vsel %vm579, %v382, 0
      %v668 = vsel %vm579, %v383, 0
      %v671 = vsel %vm579, %v384, 0
      %v674 = vsel %vm579, %v385, 0
      %676 = vmatprep.subr.mxu0 0.0
      %677 = vmatpush1.msra.mxu0 %v386
      %678 = vmatprep.subr.mxu0 0.0
      %679 = vmatpush1.msra.mxu0 0.0
      %680 = vmatprep.subr.mxu0 0.0
      %681 = vmatpush1.msra.mxu0 0.0
      %682 = vmatprep.subr.mxu0 0.0
      %683 = vmatpush1.msra.mxu0 0.0
      %684 = vmatprep.subr.mxu0 0.0
      %685 = vmatpush1.msra.mxu0 0.0
      %686 = vmatprep.subr.mxu0 0.0
      %687 = vmatpush1.msra.mxu0 0.0
      %688 = vmatprep.subr.mxu0 0.0
      %689 = vmatpush1.msra.mxu0 0.0
      %690 = vmatprep.subr.mxu0 0.0
      %691 = vmatpush1.msra.mxu0 0.0
      %692 = vmatprep.subr.mxu0 0.0
      %693 = vmatpush1.msra.mxu0 0.0
      %694 = vmatprep.subr.mxu0 0.0
      %695 = vmatpush1.msra.mxu0 0.0
      %696 = vmatprep.subr.mxu0 0.0
      %697 = vmatpush1.msra.mxu0 0.0
      %698 = vmatprep.subr.mxu0 0.0
      %699 = vmatpush1.msra.mxu0 0.0
      %700 = vmatprep.subr.mxu0 0.0
      %701 = vmatpush1.msra.mxu0 0.0
      %702 = vmatprep.subr.mxu0 0.0
      %703 = vmatpush1.msra.mxu0 0.0
      %704 = vmatprep.subr.mxu0 0.0
      %705 = vmatpush1.msra.mxu0 0.0
      %706 = vmatprep.subr.mxu0 0.0
      %707 = vmatpush1.msra.mxu0 0.0
      %708 = vmatprep.subr.mxu0 0.0
      %709 = vmatpush1.msra.mxu0 0.0
      %710 = vmatprep.subr.mxu0 0.0
      %711 = vmatpush1.msra.mxu0 0.0
      %712 = vmatprep.subr.mxu0 0.0
      %713 = vmatpush1.msra.mxu0 0.0
      %714 = vmatprep.subr.mxu0 0.0
      %715 = vmatpush1.msra.mxu0 0.0
      %716 = vmatprep.subr.mxu0 0.0
      %717 = vmatpush1.msra.mxu0 0.0
      %718 = vmatprep.subr.mxu0 0.0
      %719 = vmatpush1.msra.mxu0 0.0
      %720 = vmatprep.subr.mxu0 0.0
      %721 = vmatpush1.msra.mxu0 0.0
      %722 = vmatprep.subr.mxu0 0.0
      %723 = vmatpush1.msra.mxu0 0.0
      %724 = vmatprep.subr.mxu0 0.0
      %725 = vmatpush1.msra.mxu0 0.0
      %726 = vmatprep.subr.mxu0 0.0
      %727 = vmatpush1.msra.mxu0 0.0
      %728 = vmatprep.subr.mxu0 0.0
      %729 = vmatpush1.msra.mxu0 0.0
      %730 = vmatprep.subr.mxu0 0.0
      %731 = vmatpush1.msra.mxu0 0.0
      %732 = vmatprep.subr.mxu0 0.0
      %733 = vmatpush1.msra.mxu0 0.0
      %734 = vmatprep.subr.mxu0 0.0
      %735 = vmatpush1.msra.mxu0 0.0
      %736 = vmatprep.subr.mxu0 0.0
      %737 = vmatpush1.msra.mxu0 0.0
      %738 = vmatprep.subr.mxu0 0.0
      %739 = vmatpush1.msra.mxu0 0.0
      %740 = vmatprep.mubr.f32.mxu0 0.0
      %741 = vmatmul.mubr.f32.gmra.mrb[0].mxu0 %v581
      %v742 = vpop.f32.mrb[0].mxu0
      %v743 = vadd.f32 %v422, %v742
      %v744 = vpop.f32.mrb[0].mxu0
      %745 = vmatprep.mubr.f32.mxu0 0.0
      %746 = vmatmul.mubr.f32.gmra.mrb[0].mxu0 %v584
      %v747 = vpop.f32.mrb[0].mxu0
      %v748 = vadd.f32 %v427, %v747
      %v749 = vpop.f32.mrb[0].mxu0
      %750 = vmatprep.mubr.f32.mxu0 0.0
      %751 = vmatmul.mubr.f32.gmra.mrb[0].mxu0 %v587
      %v752 = vpop.f32.mrb[0].mxu0
      %v753 = vadd.f32 %v432, %v752
      %v754 = vpop.f32.mrb[0].mxu0
      %755 = vmatprep.mubr.f32.mxu0 0.0
      %756 = vmatmul.mubr.f32.gmra.mrb[0].mxu0 %v590
      %v757 = vpop.f32.mrb[0].mxu0
      %v758 = vadd.f32 %v437, %v757
      %v759 = vpop.f32.mrb[0].mxu0
      %760 = vmatprep.mubr.f32.mxu0 0.0
      %761 = vmatmul.mubr.f32.gmra.mrb[0].mxu0 %v593
      %v762 = vpop.f32.mrb[0].mxu0
      %v763 = vadd.f32 %v442, %v762
      %v764 = vpop.f32.mrb[0].mxu0
      %765 = vmatprep.mubr.f32.mxu0 0.0
      %766 = vmatmul.mubr.f32.gmra.mrb[0].mxu0 %v596
      %v767 = vpop.f32.mrb[0].mxu0
      %v768 = vadd.f32 %v447, %v767
      %v769 = vpop.f32.mrb[0].mxu0
      %770 = vmatprep.mubr.f32.mxu0 0.0
      %771 = vmatmul.mubr.f32.gmra.mrb[0].mxu0 %v599
      %v772 = vpop.f32.mrb[0].mxu0
      %v773 = vadd.f32 %v452, %v772
      %v774 = vpop.f32.mrb[0].mxu0
      %775 = vmatprep.mubr.f32.mxu0 0.0
      %776 = vmatmul.mubr.f32.gmra.mrb[0].mxu0 %v602
      %v777 = vpop.f32.mrb[0].mxu0
      %v778 = vadd.f32 %v457, %v777
      %v779 = vpop.f32.mrb[0].mxu0
      %780 = vmatprep.mubr.f32.mxu0 0.0
      %781 = vmatmul.mubr.f32.gmra.mrb[0].mxu0 %v605
      %v782 = vpop.f32.mrb[0].mxu0
      %v783 = vadd.f32 %v462, %v782
      %v784 = vpop.f32.mrb[0].mxu0
      %785 = vmatprep.mubr.f32.mxu0 0.0
      %786 = vmatmul.mubr.f32.gmra.mrb[0].mxu0 %v608
      %v787 = vpop.f32.mrb[0].mxu0
      %v788 = vadd.f32 %v467, %v787
      %v789 = vpop.f32.mrb[0].mxu0
      %790 = vmatprep.mubr.f32.mxu0 0.0
      %791 = vmatmul.mubr.f32.gmra.mrb[0].mxu0 %v611
      %v792 = vpop.f32.mrb[0].mxu0
      %v793 = vadd.f32 %v472, %v792
      %v794 = vpop.f32.mrb[0].mxu0
      %795 = vmatprep.mubr.f32.mxu0 0.0
      %796 = vmatmul.mubr.f32.gmra.mrb[0].mxu0 %v614
      %v797 = vpop.f32.mrb[0].mxu0
      %v798 = vadd.f32 %v477, %v797
      %v799 = vpop.f32.mrb[0].mxu0
      %800 = vmatprep.mubr.f32.mxu0 0.0
      %801 = vmatmul.mubr.f32.gmra.mrb[0].mxu0 %v617
      %v802 = vpop.f32.mrb[0].mxu0
      %v803 = vadd.f32 %v482, %v802
      %v804 = vpop.f32.mrb[0].mxu0
      %805 = vmatprep.mubr.f32.mxu0 0.0
      %806 = vmatmul.mubr.f32.gmra.mrb[0].mxu0 %v620
      %v807 = vpop.f32.mrb[0].mxu0
      %v808 = vadd.f32 %v487, %v807
      %v809 = vpop.f32.mrb[0].mxu0
      %810 = vmatprep.mubr.f32.mxu0 0.0
      %811 = vmatmul.mubr.f32.gmra.mrb[0].mxu0 %v623
      %v812 = vpop.f32.mrb[0].mxu0
      %v813 = vadd.f32 %v492, %v812
      %v814 = vpop.f32.mrb[0].mxu0
      %815 = vmatprep.mubr.f32.mxu0 0.0
      %816 = vmatmul.mubr.f32.gmra.mrb[0].mxu0 %v626
      %v817 = vpop.f32.mrb[0].mxu0
      %v818 = vadd.f32 %v497, %v817
      %v819 = vpop.f32.mrb[0].mxu0
      %820 = vmatprep.mubr.f32.mxu0 0.0
      %821 = vmatmul.mubr.f32.gmra.mrb[0].mxu0 %v629
      %v822 = vpop.f32.mrb[0].mxu0
      %v823 = vadd.f32 %v502, %v822
      %v824 = vpop.f32.mrb[0].mxu0
      %825 = vmatprep.mubr.f32.mxu0 0.0
      %826 = vmatmul.mubr.f32.gmra.mrb[0].mxu0 %v632
      %v827 = vpop.f32.mrb[0].mxu0
      %v828 = vadd.f32 %v507, %v827
      %v829 = vpop.f32.mrb[0].mxu0
      %830 = vmatprep.mubr.f32.mxu0 0.0
      %831 = vmatmul.mubr.f32.gmra.mrb[0].mxu0 %v635
      %v832 = vpop.f32.mrb[0].mxu0
      %v833 = vadd.f32 %v512, %v832
      %v834 = vpop.f32.mrb[0].mxu0
      %835 = vmatprep.mubr.f32.mxu0 0.0
      %836 = vmatmul.mubr.f32.gmra.mrb[0].mxu0 %v638
      %v837 = vpop.f32.mrb[0].mxu0
      %v838 = vadd.f32 %v517, %v837
      %v839 = vpop.f32.mrb[0].mxu0
      %840 = vmatprep.mubr.f32.mxu0 0.0
      %841 = vmatmul.mubr.f32.gmra.mrb[0].mxu0 %v641
      %v842 = vpop.f32.mrb[0].mxu0
      %v843 = vadd.f32 %v522, %v842
      %v844 = vpop.f32.mrb[0].mxu0
      %845 = vmatprep.mubr.f32.mxu0 0.0
      %846 = vmatmul.mubr.f32.gmra.mrb[0].mxu0 %v644
      %v847 = vpop.f32.mrb[0].mxu0
      %v848 = vadd.f32 %v527, %v847
      %v849 = vpop.f32.mrb[0].mxu0
      %850 = vmatprep.mubr.f32.mxu0 0.0
      %851 = vmatmul.mubr.f32.gmra.mrb[0].mxu0 %v647
      %v852 = vpop.f32.mrb[0].mxu0
      %v853 = vadd.f32 %v532, %v852
      %v854 = vpop.f32.mrb[0].mxu0
      %855 = vmatprep.mubr.f32.mxu0 0.0
      %856 = vmatmul.mubr.f32.gmra.mrb[0].mxu0 %v650
      %v857 = vpop.f32.mrb[0].mxu0
      %v858 = vadd.f32 %v537, %v857
      %v859 = vpop.f32.mrb[0].mxu0
      %860 = vmatprep.mubr.f32.mxu0 0.0
      %861 = vmatmul.mubr.f32.gmra.mrb[0].mxu0 %v653
      %v862 = vpop.f32.mrb[0].mxu0
      %v863 = vadd.f32 %v542, %v862
      %v864 = vpop.f32.mrb[0].mxu0
      %865 = vmatprep.mubr.f32.mxu0 0.0
      %866 = vmatmul.mubr.f32.gmra.mrb[0].mxu0 %v656
      %v867 = vpop.f32.mrb[0].mxu0
      %v868 = vadd.f32 %v547, %v867
      %v869 = vpop.f32.mrb[0].mxu0
      %870 = vmatprep.mubr.f32.mxu0 0.0
      %871 = vmatmul.mubr.f32.gmra.mrb[0].mxu0 %v659
      %v872 = vpop.f32.mrb[0].mxu0
      %v873 = vadd.f32 %v552, %v872
      %v874 = vpop.f32.mrb[0].mxu0
      %875 = vmatprep.mubr.f32.mxu0 0.0
      %876 = vmatmul.mubr.f32.gmra.mrb[0].mxu0 %v662
      %v877 = vpop.f32.mrb[0].mxu0
      %v878 = vadd.f32 %v557, %v877
      %v879 = vpop.f32.mrb[0].mxu0
      %880 = vmatprep.mubr.f32.mxu0 0.0
      %881 = vmatmul.mubr.f32.gmra.mrb[0].mxu0 %v665
      %v882 = vpop.f32.mrb[0].mxu0
      %v883 = vadd.f32 %v562, %v882
      %v884 = vpop.f32.mrb[0].mxu0
      %885 = vmatprep.mubr.f32.mxu0 0.0
      %886 = vmatmul.mubr.f32.gmra.mrb[0].mxu0 %v668
      %v887 = vpop.f32.mrb[0].mxu0
      %v888 = vadd.f32 %v567, %v887
      %v889 = vpop.f32.mrb[0].mxu0
      %890 = vmatprep.mubr.f32.mxu0 0.0
      %891 = vmatmul.mubr.f32.gmra.mrb[0].mxu0 %v671
      %v892 = vpop.f32.mrb[0].mxu0
      %v893 = vadd.f32 %v572, %v892
      %v894 = vpop.f32.mrb[0].mxu0
      %895 = vmatprep.mubr.f32.mxu0 0.0
      %896 = vmatmul.mubr.f32.gmra.mrb[0].mxu0 %v674
      %v897 = vpop.f32.mrb[0].mxu0
      %v898 = vadd.f32 %v577, %v897
      %v899 = vpop.f32.mrb[0].mxu0
      %900 = vdwg.mxu0
      %v901 = vmax.f32 %v743, 0.0
      %v902 = vmax.f32 %v748, 0.0
      %v903 = vmax.f32 %v753, 0.0
      %v904 = vmax.f32 %v758, 0.0
      %v905 = vmax.f32 %v763, 0.0
      %v906 = vmax.f32 %v768, 0.0
      %v907 = vmax.f32 %v773, 0.0
      %v908 = vmax.f32 %v778, 0.0
      %v909 = vmax.f32 %v783, 0.0
      %v910 = vmax.f32 %v788, 0.0
      %v911 = vmax.f32 %v793, 0.0
      %v912 = vmax.f32 %v798, 0.0
      %v913 = vmax.f32 %v803, 0.0
      %v914 = vmax.f32 %v808, 0.0
      %v915 = vmax.f32 %v813, 0.0
      %v916 = vmax.f32 %v818, 0.0
      %v917 = vmax.f32 %v823, 0.0
      %v918 = vmax.f32 %v828, 0.0
      %v919 = vmax.f32 %v833, 0.0
      %v920 = vmax.f32 %v838, 0.0
      %v921 = vmax.f32 %v843, 0.0
      %v922 = vmax.f32 %v848, 0.0
      %v923 = vmax.f32 %v853, 0.0
      %v924 = vmax.f32 %v858, 0.0
      %v925 = vmax.f32 %v863, 0.0
      %v926 = vmax.f32 %v868, 0.0
      %v927 = vmax.f32 %v873, 0.0
      %v928 = vmax.f32 %v878, 0.0
      %v929 = vmax.f32 %v883, 0.0
      %v930 = vmax.f32 %v888, 0.0
      %v931 = vmax.f32 %v893, 0.0
      %v932 = vmax.f32 %v898, 0.0
      %v933 = vld [vmem:[%s340] sm:$0xf]
      %v934 = vld [vmem:[%s340 + $0x4] sm:$0xf]
      %v935 = vld [vmem:[%s340 + $0x8] sm:$0xf]
      %v936 = vld [vmem:[%s340 + $0xc] sm:$0xf]
      %v937 = vld [vmem:[%s340 + $0x10] sm:$0xf]
      %v938 = vld [vmem:[%s340 + $0x14] sm:$0xf]
      %v939 = vld [vmem:[%s340 + $0x18] sm:$0xf]
      %v940 = vld [vmem:[%s340 + $0x1c] sm:$0xf]
      %v941 = vld [vmem:[%s340 + $0x20] sm:$0xf]
      %v942 = vld [vmem:[%s340 + $0x24] sm:$0xf]
      %v943 = vld [vmem:[%s340 + $0x28] sm:$0xf]
      %v944 = vld [vmem:[%s340 + $0x2c] sm:$0xf]
      %v945 = vld [vmem:[%s340 + $0x30] sm:$0xf]
      %v946 = vld [vmem:[%s340 + $0x34] sm:$0xf]
      %v947 = vld [vmem:[%s340 + $0x38] sm:$0xf]
      %v948 = vld [vmem:[%s340 + $0x3c] sm:$0xf]
      %v949 = vld [vmem:[%s346] sm:$0xf]
      %v950 = vld [vmem:[%s346 + $0x4] sm:$0xf]
      %v951 = vld [vmem:[%s346 + $0x8] sm:$0xf]
      %v952 = vld [vmem:[%s346 + $0xc] sm:$0xf]
      %v953 = vld [vmem:[%s346 + $0x10] sm:$0xf]
      %v954 = vld [vmem:[%s346 + $0x14] sm:$0xf]
      %v955 = vld [vmem:[%s346 + $0x18] sm:$0xf]
      %v956 = vld [vmem:[%s346 + $0x1c] sm:$0xf]
      %v957 = vld [vmem:[%s346 + $0x20] sm:$0xf]
      %v958 = vld [vmem:[%s346 + $0x24] sm:$0xf]
      %v959 = vld [vmem:[%s346 + $0x28] sm:$0xf]
      %v960 = vld [vmem:[%s346 + $0x2c] sm:$0xf]
      %v961 = vld [vmem:[%s346 + $0x30] sm:$0xf]
      %v962 = vld [vmem:[%s346 + $0x34] sm:$0xf]
      %v963 = vld [vmem:[%s346 + $0x38] sm:$0xf]
      %v964 = vld [vmem:[%s346 + $0x3c] sm:$0xf]
      %966 = vset.pattern.permute.xlu0 0
      %967 = vperm.xlu0 %966, %v949
      %v968 = vpop.permute.xlu0 %967
      %971 = vset.pattern.permute.xlu0 0
      %972 = vperm.xlu0 %971, %v950
      %v973 = vpop.permute.xlu0 %972
      %976 = vset.pattern.permute.xlu0 0
      %977 = vperm.xlu0 %976, %v951
      %v978 = vpop.permute.xlu0 %977
      %981 = vset.pattern.permute.xlu0 0
      %982 = vperm.xlu0 %981, %v952
      %v983 = vpop.permute.xlu0 %982
      %986 = vset.pattern.permute.xlu0 0
      %987 = vperm.xlu0 %986, %v953
      %v988 = vpop.permute.xlu0 %987
      %991 = vset.pattern.permute.xlu0 0
      %992 = vperm.xlu0 %991, %v954
      %v993 = vpop.permute.xlu0 %992
      %996 = vset.pattern.permute.xlu0 0
      %997 = vperm.xlu0 %996, %v955
      %v998 = vpop.permute.xlu0 %997
      %1001 = vset.pattern.permute.xlu0 0
      %1002 = vperm.xlu0 %1001, %v956
      %v1003 = vpop.permute.xlu0 %1002
      %1006 = vset.pattern.permute.xlu0 0
      %1007 = vperm.xlu0 %1006, %v957
      %v1008 = vpop.permute.xlu0 %1007
      %1011 = vset.pattern.permute.xlu0 0
      %1012 = vperm.xlu0 %1011, %v958
      %v1013 = vpop.permute.xlu0 %1012
      %1016 = vset.pattern.permute.xlu0 0
      %1017 = vperm.xlu0 %1016, %v959
      %v1018 = vpop.permute.xlu0 %1017
      %1021 = vset.pattern.permute.xlu0 0
      %1022 = vperm.xlu0 %1021, %v960
      %v1023 = vpop.permute.xlu0 %1022
      %1026 = vset.pattern.permute.xlu0 0
      %1027 = vperm.xlu0 %1026, %v961
      %v1028 = vpop.permute.xlu0 %1027
      %1031 = vset.pattern.permute.xlu0 0
      %1032 = vperm.xlu0 %1031, %v962
      %v1033 = vpop.permute.xlu0 %1032
      %1036 = vset.pattern.permute.xlu0 0
      %1037 = vperm.xlu0 %1036, %v963
      %v1038 = vpop.permute.xlu0 %1037
      %1041 = vset.pattern.permute.xlu0 0
      %1042 = vperm.xlu0 %1041, %v964
      %v1043 = vpop.permute.xlu0 %1042
      %vm1045 = vcmask 130048
      %v1047 = vsel %vm1045, %v933, 0
      %1049 = vmatprep.subr.mxu0 0.0
      %1050 = vmatpush1.msra.mxu0 %v901
      %1051 = vmatprep.subr.mxu0 0.0
      %1052 = vmatpush1.msra.mxu0 %v902
      %1053 = vmatprep.subr.mxu0 0.0
      %1054 = vmatpush1.msra.mxu0 0.0
      %1055 = vmatprep.subr.mxu0 0.0
      %1056 = vmatpush1.msra.mxu0 0.0
      %1057 = vmatprep.subr.mxu0 0.0
      %1058 = vmatpush1.msra.mxu0 0.0
      %1059 = vmatprep.subr.mxu0 0.0
      %1060 = vmatpush1.msra.mxu0 0.0
      %1061 = vmatprep.subr.mxu0 0.0
      %1062 = vmatpush1.msra.mxu0 0.0
      %1063 = vmatprep.subr.mxu0 0.0
      %1064 = vmatpush1.msra.mxu0 0.0
      %1065 = vmatprep.subr.mxu0 0.0
      %1066 = vmatpush1.msra.mxu0 0.0
      %1067 = vmatprep.subr.mxu0 0.0
      %1068 = vmatpush1.msra.mxu0 0.0
      %1069 = vmatprep.subr.mxu0 0.0
      %1070 = vmatpush1.msra.mxu0 0.0
      %1071 = vmatprep.subr.mxu0 0.0
      %1072 = vmatpush1.msra.mxu0 0.0
      %1073 = vmatprep.subr.mxu0 0.0
      %1074 = vmatpush1.msra.mxu0 0.0
      %1075 = vmatprep.subr.mxu0 0.0
      %1076 = vmatpush1.msra.mxu0 0.0
      %1077 = vmatprep.subr.mxu0 0.0
      %1078 = vmatpush1.msra.mxu0 0.0
      %1079 = vmatprep.subr.mxu0 0.0
      %1080 = vmatpush1.msra.mxu0 0.0
      %1081 = vmatprep.subr.mxu0 0.0
      %1082 = vmatpush1.msra.mxu0 0.0
      %1083 = vmatprep.subr.mxu0 0.0
      %1084 = vmatpush1.msra.mxu0 0.0
      %1085 = vmatprep.subr.mxu0 0.0
      %1086 = vmatpush1.msra.mxu0 0.0
      %1087 = vmatprep.subr.mxu0 0.0
      %1088 = vmatpush1.msra.mxu0 0.0
      %1089 = vmatprep.subr.mxu0 0.0
      %1090 = vmatpush1.msra.mxu0 0.0
      %1091 = vmatprep.subr.mxu0 0.0
      %1092 = vmatpush1.msra.mxu0 0.0
      %1093 = vmatprep.subr.mxu0 0.0
      %1094 = vmatpush1.msra.mxu0 0.0
      %1095 = vmatprep.subr.mxu0 0.0
      %1096 = vmatpush1.msra.mxu0 0.0
      %1097 = vmatprep.subr.mxu0 0.0
      %1098 = vmatpush1.msra.mxu0 0.0
      %1099 = vmatprep.subr.mxu0 0.0
      %1100 = vmatpush1.msra.mxu0 0.0
      %1101 = vmatprep.subr.mxu0 0.0
      %1102 = vmatpush1.msra.mxu0 0.0
      %1103 = vmatprep.subr.mxu0 0.0
      %1104 = vmatpush1.msra.mxu0 0.0
      %1105 = vmatprep.subr.mxu0 0.0
      %1106 = vmatpush1.msra.mxu0 0.0
      %1107 = vmatprep.subr.mxu0 0.0
      %1108 = vmatpush1.msra.mxu0 0.0
      %1109 = vmatprep.subr.mxu0 0.0
      %1110 = vmatpush1.msra.mxu0 0.0
      %1111 = vmatprep.subr.mxu0 0.0
      %1112 = vmatpush1.msra.mxu0 0.0
      %1113 = vmatprep.mubr.f32.mxu0 0.0
      %1114 = vmatmul.mubr.f32.gmra.mrb[0].mxu0 %v1047
      %v1115 = vpop.f32.mrb[0].mxu0
      %v1116 = vadd.f32 %v968, %v1115
      %v1117 = vpop.f32.mrb[0].mxu0
      %1118 = vdwg.mxu0
      %v1120 = vsel %vm1045, %v934, 0
      %1122 = vmatprep.subr.mxu0 0.0
      %1123 = vmatpush1.msra.mxu0 %v903
      %1124 = vmatprep.subr.mxu0 0.0
      %1125 = vmatpush1.msra.mxu0 %v904
      %1126 = vmatprep.subr.mxu0 0.0
      %1127 = vmatpush1.msra.mxu0 0.0
      %1128 = vmatprep.subr.mxu0 0.0
      %1129 = vmatpush1.msra.mxu0 0.0
      %1130 = vmatprep.subr.mxu0 0.0
      %1131 = vmatpush1.msra.mxu0 0.0
      %1132 = vmatprep.subr.mxu0 0.0
      %1133 = vmatpush1.msra.mxu0 0.0
      %1134 = vmatprep.subr.mxu0 0.0
      %1135 = vmatpush1.msra.mxu0 0.0
      %1136 = vmatprep.subr.mxu0 0.0
      %1137 = vmatpush1.msra.mxu0 0.0
      %1138 = vmatprep.subr.mxu0 0.0
      %1139 = vmatpush1.msra.mxu0 0.0
      %1140 = vmatprep.subr.mxu0 0.0
      %1141 = vmatpush1.msra.mxu0 0.0
      %1142 = vmatprep.subr.mxu0 0.0
      %1143 = vmatpush1.msra.mxu0 0.0
      %1144 = vmatprep.subr.mxu0 0.0
      %1145 = vmatpush1.msra.mxu0 0.0
      %1146 = vmatprep.subr.mxu0 0.0
      %1147 = vmatpush1.msra.mxu0 0.0
      %1148 = vmatprep.subr.mxu0 0.0
      %1149 = vmatpush1.msra.mxu0 0.0
      %1150 = vmatprep.subr.mxu0 0.0
      %1151 = vmatpush1.msra.mxu0 0.0
      %1152 = vmatprep.subr.mxu0 0.0
      %1153 = vmatpush1.msra.mxu0 0.0
      %1154 = vmatprep.subr.mxu0 0.0
      %1155 = vmatpush1.msra.mxu0 0.0
      %1156 = vmatprep.subr.mxu0 0.0
      %1157 = vmatpush1.msra.mxu0 0.0
      %1158 = vmatprep.subr.mxu0 0.0
      %1159 = vmatpush1.msra.mxu0 0.0
      %1160 = vmatprep.subr.mxu0 0.0
      %1161 = vmatpush1.msra.mxu0 0.0
      %1162 = vmatprep.subr.mxu0 0.0
      %1163 = vmatpush1.msra.mxu0 0.0
      %1164 = vmatprep.subr.mxu0 0.0
      %1165 = vmatpush1.msra.mxu0 0.0
      %1166 = vmatprep.subr.mxu0 0.0
      %1167 = vmatpush1.msra.mxu0 0.0
      %1168 = vmatprep.subr.mxu0 0.0
      %1169 = vmatpush1.msra.mxu0 0.0
      %1170 = vmatprep.subr.mxu0 0.0
      %1171 = vmatpush1.msra.mxu0 0.0
      %1172 = vmatprep.subr.mxu0 0.0
      %1173 = vmatpush1.msra.mxu0 0.0
      %1174 = vmatprep.subr.mxu0 0.0
      %1175 = vmatpush1.msra.mxu0 0.0
      %1176 = vmatprep.subr.mxu0 0.0
      %1177 = vmatpush1.msra.mxu0 0.0
      %1178 = vmatprep.subr.mxu0 0.0
      %1179 = vmatpush1.msra.mxu0 0.0
      %1180 = vmatprep.subr.mxu0 0.0
      %1181 = vmatpush1.msra.mxu0 0.0
      %1182 = vmatprep.subr.mxu0 0.0
      %1183 = vmatpush1.msra.mxu0 0.0
      %1184 = vmatprep.subr.mxu0 0.0
      %1185 = vmatpush1.msra.mxu0 0.0
      %1186 = vmatprep.mubr.f32.mxu0 0.0
      %1187 = vmatmul.mubr.f32.gmra.mrb[0].mxu0 %v1120
      %v1188 = vpop.f32.mrb[0].mxu0
      %v1189 = vadd.f32 %v973, %v1188
      %v1190 = vpop.f32.mrb[0].mxu0
      %1191 = vdwg.mxu0
      %v1193 = vsel %vm1045, %v935, 0
      %1195 = vmatprep.subr.mxu0 0.0
      %1196 = vmatpush1.msra.mxu0 %v905
      %1197 = vmatprep.subr.mxu0 0.0
      %1198 = vmatpush1.msra.mxu0 %v906
      %1199 = vmatprep.subr.mxu0 0.0
      %1200 = vmatpush1.msra.mxu0 0.0
      %1201 = vmatprep.subr.mxu0 0.0
      %1202 = vmatpush1.msra.mxu0 0.0
      %1203 = vmatprep.subr.mxu0 0.0
      %1204 = vmatpush1.msra.mxu0 0.0
      %1205 = vmatprep.subr.mxu0 0.0
      %1206 = vmatpush1.msra.mxu0 0.0
      %1207 = vmatprep.subr.mxu0 0.0
      %1208 = vmatpush1.msra.mxu0 0.0
      %1209 = vmatprep.subr.mxu0 0.0
      %1210 = vmatpush1.msra.mxu0 0.0
      %1211 = vmatprep.subr.mxu0 0.0
      %1212 = vmatpush1.msra.mxu0 0.0
      %1213 = vmatprep.subr.mxu0 0.0
      %1214 = vmatpush1.msra.mxu0 0.0
      %1215 = vmatprep.subr.mxu0 0.0
      %1216 = vmatpush1.msra.mxu0 0.0
      %1217 = vmatprep.subr.mxu0 0.0
      %1218 = vmatpush1.msra.mxu0 0.0
      %1219 = vmatprep.subr.mxu0 0.0
      %1220 = vmatpush1.msra.mxu0 0.0
      %1221 = vmatprep.subr.mxu0 0.0
      %1222 = vmatpush1.msra.mxu0 0.0
      %1223 = vmatprep.subr.mxu0 0.0
      %1224 = vmatpush1.msra.mxu0 0.0
      %1225 = vmatprep.subr.mxu0 0.0
      %1226 = vmatpush1.msra.mxu0 0.0
      %1227 = vmatprep.subr.mxu0 0.0
      %1228 = vmatpush1.msra.mxu0 0.0
      %1229 = vmatprep.subr.mxu0 0.0
      %1230 = vmatpush1.msra.mxu0 0.0
      %1231 = vmatprep.subr.mxu0 0.0
      %1232 = vmatpush1.msra.mxu0 0.0
      %1233 = vmatprep.subr.mxu0 0.0
      %1234 = vmatpush1.msra.mxu0 0.0
      %1235 = vmatprep.subr.mxu0 0.0
      %1236 = vmatpush1.msra.mxu0 0.0
      %1237 = vmatprep.subr.mxu0 0.0
      %1238 = vmatpush1.msra.mxu0 0.0
      %1239 = vmatprep.subr.mxu0 0.0
      %1240 = vmatpush1.msra.mxu0 0.0
      %1241 = vmatprep.subr.mxu0 0.0
      %1242 = vmatpush1.msra.mxu0 0.0
      %1243 = vmatprep.subr.mxu0 0.0
      %1244 = vmatpush1.msra.mxu0 0.0
      %1245 = vmatprep.subr.mxu0 0.0
      %1246 = vmatpush1.msra.mxu0 0.0
      %1247 = vmatprep.subr.mxu0 0.0
      %1248 = vmatpush1.msra.mxu0 0.0
      %1249 = vmatprep.subr.mxu0 0.0
      %1250 = vmatpush1.msra.mxu0 0.0
      %1251 = vmatprep.subr.mxu0 0.0
      %1252 = vmatpush1.msra.mxu0 0.0
      %1253 = vmatprep.subr.mxu0 0.0
      %1254 = vmatpush1.msra.mxu0 0.0
      %1255 = vmatprep.subr.mxu0 0.0
      %1256 = vmatpush1.msra.mxu0 0.0
      %1257 = vmatprep.subr.mxu0 0.0
      %1258 = vmatpush1.msra.mxu0 0.0
      %1259 = vmatprep.mubr.f32.mxu0 0.0
      %1260 = vmatmul.mubr.f32.gmra.mrb[0].mxu0 %v1193
      %v1261 = vpop.f32.mrb[0].mxu0
      %v1262 = vadd.f32 %v978, %v1261
      %v1263 = vpop.f32.mrb[0].mxu0
      %1264 = vdwg.mxu0
      %v1266 = vsel %vm1045, %v936, 0
      %1268 = vmatprep.subr.mxu0 0.0
      %1269 = vmatpush1.msra.mxu0 %v907
      %1270 = vmatprep.subr.mxu0 0.0
      %1271 = vmatpush1.msra.mxu0 %v908
      %1272 = vmatprep.subr.mxu0 0.0
      %1273 = vmatpush1.msra.mxu0 0.0
      %1274 = vmatprep.subr.mxu0 0.0
      %1275 = vmatpush1.msra.mxu0 0.0
      %1276 = vmatprep.subr.mxu0 0.0
      %1277 = vmatpush1.msra.mxu0 0.0
      %1278 = vmatprep.subr.mxu0 0.0
      %1279 = vmatpush1.msra.mxu0 0.0
      %1280 = vmatprep.subr.mxu0 0.0
      %1281 = vmatpush1.msra.mxu0 0.0
      %1282 = vmatprep.subr.mxu0 0.0
      %1283 = vmatpush1.msra.mxu0 0.0
      %1284 = vmatprep.subr.mxu0 0.0
      %1285 = vmatpush1.msra.mxu0 0.0
      %1286 = vmatprep.subr.mxu0 0.0
      %1287 = vmatpush1.msra.mxu0 0.0
      %1288 = vmatprep.subr.mxu0 0.0
      %1289 = vmatpush1.msra.mxu0 0.0
      %1290 = vmatprep.subr.mxu0 0.0
      %1291 = vmatpush1.msra.mxu0 0.0
      %1292 = vmatprep.subr.mxu0 0.0
      %1293 = vmatpush1.msra.mxu0 0.0
      %1294 = vmatprep.subr.mxu0 0.0
      %1295 = vmatpush1.msra.mxu0 0.0
      %1296 = vmatprep.subr.mxu0 0.0
      %1297 = vmatpush1.msra.mxu0 0.0
      %1298 = vmatprep.subr.mxu0 0.0
      %1299 = vmatpush1.msra.mxu0 0.0
      %1300 = vmatprep.subr.mxu0 0.0
      %1301 = vmatpush1.msra.mxu0 0.0
      %1302 = vmatprep.subr.mxu0 0.0
      %1303 = vmatpush1.msra.mxu0 0.0
      %1304 = vmatprep.subr.mxu0 0.0
      %1305 = vmatpush1.msra.mxu0 0.0
      %1306 = vmatprep.subr.mxu0 0.0
      %1307 = vmatpush1.msra.mxu0 0.0
      %1308 = vmatprep.subr.mxu0 0.0
      %1309 = vmatpush1.msra.mxu0 0.0
      %1310 = vmatprep.subr.mxu0 0.0
      %1311 = vmatpush1.msra.mxu0 0.0
      %1312 = vmatprep.subr.mxu0 0.0
      %1313 = vmatpush1.msra.mxu0 0.0
      %1314 = vmatprep.subr.mxu0 0.0
      %1315 = vmatpush1.msra.mxu0 0.0
      %1316 = vmatprep.subr.mxu0 0.0
      %1317 = vmatpush1.msra.mxu0 0.0
      %1318 = vmatprep.subr.mxu0 0.0
      %1319 = vmatpush1.msra.mxu0 0.0
      %1320 = vmatprep.subr.mxu0 0.0
      %1321 = vmatpush1.msra.mxu0 0.0
      %1322 = vmatprep.subr.mxu0 0.0
      %1323 = vmatpush1.msra.mxu0 0.0
      %1324 = vmatprep.subr.mxu0 0.0
      %1325 = vmatpush1.msra.mxu0 0.0
      %1326 = vmatprep.subr.mxu0 0.0
      %1327 = vmatpush1.msra.mxu0 0.0
      %1328 = vmatprep.subr.mxu0 0.0
      %1329 = vmatpush1.msra.mxu0 0.0
      %1330 = vmatprep.subr.mxu0 0.0
      %1331 = vmatpush1.msra.mxu0 0.0
      %1332 = vmatprep.mubr.f32.mxu0 0.0
      %1333 = vmatmul.mubr.f32.gmra.mrb[0].mxu0 %v1266
      %v1334 = vpop.f32.mrb[0].mxu0
      %v1335 = vadd.f32 %v983, %v1334
      %v1336 = vpop.f32.mrb[0].mxu0
      %1337 = vdwg.mxu0
      %v1339 = vsel %vm1045, %v937, 0
      %1341 = vmatprep.subr.mxu0 0.0
      %1342 = vmatpush1.msra.mxu0 %v909
      %1343 = vmatprep.subr.mxu0 0.0
      %1344 = vmatpush1.msra.mxu0 %v910
      %1345 = vmatprep.subr.mxu0 0.0
      %1346 = vmatpush1.msra.mxu0 0.0
      %1347 = vmatprep.subr.mxu0 0.0
      %1348 = vmatpush1.msra.mxu0 0.0
      %1349 = vmatprep.subr.mxu0 0.0
      %1350 = vmatpush1.msra.mxu0 0.0
      %1351 = vmatprep.subr.mxu0 0.0
      %1352 = vmatpush1.msra.mxu0 0.0
      %1353 = vmatprep.subr.mxu0 0.0
      %1354 = vmatpush1.msra.mxu0 0.0
      %1355 = vmatprep.subr.mxu0 0.0
      %1356 = vmatpush1.msra.mxu0 0.0
      %1357 = vmatprep.subr.mxu0 0.0
      %1358 = vmatpush1.msra.mxu0 0.0
      %1359 = vmatprep.subr.mxu0 0.0
      %1360 = vmatpush1.msra.mxu0 0.0
      %1361 = vmatprep.subr.mxu0 0.0
      %1362 = vmatpush1.msra.mxu0 0.0
      %1363 = vmatprep.subr.mxu0 0.0
      %1364 = vmatpush1.msra.mxu0 0.0
      %1365 = vmatprep.subr.mxu0 0.0
      %1366 = vmatpush1.msra.mxu0 0.0
      %1367 = vmatprep.subr.mxu0 0.0
      %1368 = vmatpush1.msra.mxu0 0.0
      %1369 = vmatprep.subr.mxu0 0.0
      %1370 = vmatpush1.msra.mxu0 0.0
      %1371 = vmatprep.subr.mxu0 0.0
      %1372 = vmatpush1.msra.mxu0 0.0
      %1373 = vmatprep.subr.mxu0 0.0
      %1374 = vmatpush1.msra.mxu0 0.0
      %1375 = vmatprep.subr.mxu0 0.0
      %1376 = vmatpush1.msra.mxu0 0.0
      %1377 = vmatprep.subr.mxu0 0.0
      %1378 = vmatpush1.msra.mxu0 0.0
      %1379 = vmatprep.subr.mxu0 0.0
      %1380 = vmatpush1.msra.mxu0 0.0
      %1381 = vmatprep.subr.mxu0 0.0
      %1382 = vmatpush1.msra.mxu0 0.0
      %1383 = vmatprep.subr.mxu0 0.0
      %1384 = vmatpush1.msra.mxu0 0.0
      %1385 = vmatprep.subr.mxu0 0.0
      %1386 = vmatpush1.msra.mxu0 0.0
      %1387 = vmatprep.subr.mxu0 0.0
      %1388 = vmatpush1.msra.mxu0 0.0
      %1389 = vmatprep.subr.mxu0 0.0
      %1390 = vmatpush1.msra.mxu0 0.0
      %1391 = vmatprep.subr.mxu0 0.0
      %1392 = vmatpush1.msra.mxu0 0.0
      %1393 = vmatprep.subr.mxu0 0.0
      %1394 = vmatpush1.msra.mxu0 0.0
      %1395 = vmatprep.subr.mxu0 0.0
      %1396 = vmatpush1.msra.mxu0 0.0
      %1397 = vmatprep.subr.mxu0 0.0
      %1398 = vmatpush1.msra.mxu0 0.0
      %1399 = vmatprep.subr.mxu0 0.0
      %1400 = vmatpush1.msra.mxu0 0.0
      %1401 = vmatprep.subr.mxu0 0.0
      %1402 = vmatpush1.msra.mxu0 0.0
      %1403 = vmatprep.subr.mxu0 0.0
      %1404 = vmatpush1.msra.mxu0 0.0
      %1405 = vmatprep.mubr.f32.mxu0 0.0
      %1406 = vmatmul.mubr.f32.gmra.mrb[0].mxu0 %v1339
      %v1407 = vpop.f32.mrb[0].mxu0
      %v1408 = vadd.f32 %v988, %v1407
      %v1409 = vpop.f32.mrb[0].mxu0
      %1410 = vdwg.mxu0
      %v1412 = vsel %vm1045, %v938, 0
      %1414 = vmatprep.subr.mxu0 0.0
      %1415 = vmatpush1.msra.mxu0 %v911
      %1416 = vmatprep.subr.mxu0 0.0
      %1417 = vmatpush1.msra.mxu0 %v912
      %1418 = vmatprep.subr.mxu0 0.0
      %1419 = vmatpush1.msra.mxu0 0.0
      %1420 = vmatprep.subr.mxu0 0.0
      %1421 = vmatpush1.msra.mxu0 0.0
      %1422 = vmatprep.subr.mxu0 0.0
      %1423 = vmatpush1.msra.mxu0 0.0
      %1424 = vmatprep.subr.mxu0 0.0
      %1425 = vmatpush1.msra.mxu0 0.0
      %1426 = vmatprep.subr.mxu0 0.0
      %1427 = vmatpush1.msra.mxu0 0.0
      %1428 = vmatprep.subr.mxu0 0.0
      %1429 = vmatpush1.msra.mxu0 0.0
      %1430 = vmatprep.subr.mxu0 0.0
      %1431 = vmatpush1.msra.mxu0 0.0
      %1432 = vmatprep.subr.mxu0 0.0
      %1433 = vmatpush1.msra.mxu0 0.0
      %1434 = vmatprep.subr.mxu0 0.0
      %1435 = vmatpush1.msra.mxu0 0.0
      %1436 = vmatprep.subr.mxu0 0.0
      %1437 = vmatpush1.msra.mxu0 0.0
      %1438 = vmatprep.subr.mxu0 0.0
      %1439 = vmatpush1.msra.mxu0 0.0
      %1440 = vmatprep.subr.mxu0 0.0
      %1441 = vmatpush1.msra.mxu0 0.0
      %1442 = vmatprep.subr.mxu0 0.0
      %1443 = vmatpush1.msra.mxu0 0.0
      %1444 = vmatprep.subr.mxu0 0.0
      %1445 = vmatpush1.msra.mxu0 0.0
      %1446 = vmatprep.subr.mxu0 0.0
      %1447 = vmatpush1.msra.mxu0 0.0
      %1448 = vmatprep.subr.mxu0 0.0
      %1449 = vmatpush1.msra.mxu0 0.0
      %1450 = vmatprep.subr.mxu0 0.0
      %1451 = vmatpush1.msra.mxu0 0.0
      %1452 = vmatprep.subr.mxu0 0.0
      %1453 = vmatpush1.msra.mxu0 0.0
      %1454 = vmatprep.subr.mxu0 0.0
      %1455 = vmatpush1.msra.mxu0 0.0
      %1456 = vmatprep.subr.mxu0 0.0
      %1457 = vmatpush1.msra.mxu0 0.0
      %1458 = vmatprep.subr.mxu0 0.0
      %1459 = vmatpush1.msra.mxu0 0.0
      %1460 = vmatprep.subr.mxu0 0.0
      %1461 = vmatpush1.msra.mxu0 0.0
      %1462 = vmatprep.subr.mxu0 0.0
      %1463 = vmatpush1.msra.mxu0 0.0
      %1464 = vmatprep.subr.mxu0 0.0
      %1465 = vmatpush1.msra.mxu0 0.0
      %1466 = vmatprep.subr.mxu0 0.0
      %1467 = vmatpush1.msra.mxu0 0.0
      %1468 = vmatprep.subr.mxu0 0.0
      %1469 = vmatpush1.msra.mxu0 0.0
      %1470 = vmatprep.subr.mxu0 0.0
      %1471 = vmatpush1.msra.mxu0 0.0
      %1472 = vmatprep.subr.mxu0 0.0
      %1473 = vmatpush1.msra.mxu0 0.0
      %1474 = vmatprep.subr.mxu0 0.0
      %1475 = vmatpush1.msra.mxu0 0.0
      %1476 = vmatprep.subr.mxu0 0.0
      %1477 = vmatpush1.msra.mxu0 0.0
      %1478 = vmatprep.mubr.f32.mxu0 0.0
      %1479 = vmatmul.mubr.f32.gmra.mrb[0].mxu0 %v1412
      %v1480 = vpop.f32.mrb[0].mxu0
      %v1481 = vadd.f32 %v993, %v1480
      %v1482 = vpop.f32.mrb[0].mxu0
      %1483 = vdwg.mxu0
      %v1485 = vsel %vm1045, %v939, 0
      %1487 = vmatprep.subr.mxu0 0.0
      %1488 = vmatpush1.msra.mxu0 %v913
      %1489 = vmatprep.subr.mxu0 0.0
      %1490 = vmatpush1.msra.mxu0 %v914
      %1491 = vmatprep.subr.mxu0 0.0
      %1492 = vmatpush1.msra.mxu0 0.0
      %1493 = vmatprep.subr.mxu0 0.0
      %1494 = vmatpush1.msra.mxu0 0.0
      %1495 = vmatprep.subr.mxu0 0.0
      %1496 = vmatpush1.msra.mxu0 0.0
      %1497 = vmatprep.subr.mxu0 0.0
      %1498 = vmatpush1.msra.mxu0 0.0
      %1499 = vmatprep.subr.mxu0 0.0
      %1500 = vmatpush1.msra.mxu0 0.0
      %1501 = vmatprep.subr.mxu0 0.0
      %1502 = vmatpush1.msra.mxu0 0.0
      %1503 = vmatprep.subr.mxu0 0.0
      %1504 = vmatpush1.msra.mxu0 0.0
      %1505 = vmatprep.subr.mxu0 0.0
      %1506 = vmatpush1.msra.mxu0 0.0
      %1507 = vmatprep.subr.mxu0 0.0
      %1508 = vmatpush1.msra.mxu0 0.0
      %1509 = vmatprep.subr.mxu0 0.0
      %1510 = vmatpush1.msra.mxu0 0.0
      %1511 = vmatprep.subr.mxu0 0.0
      %1512 = vmatpush1.msra.mxu0 0.0
      %1513 = vmatprep.subr.mxu0 0.0
      %1514 = vmatpush1.msra.mxu0 0.0
      %1515 = vmatprep.subr.mxu0 0.0
      %1516 = vmatpush1.msra.mxu0 0.0
      %1517 = vmatprep.subr.mxu0 0.0
      %1518 = vmatpush1.msra.mxu0 0.0
      %1519 = vmatprep.subr.mxu0 0.0
      %1520 = vmatpush1.msra.mxu0 0.0
      %1521 = vmatprep.subr.mxu0 0.0
      %1522 = vmatpush1.msra.mxu0 0.0
      %1523 = vmatprep.subr.mxu0 0.0
      %1524 = vmatpush1.msra.mxu0 0.0
      %1525 = vmatprep.subr.mxu0 0.0
      %1526 = vmatpush1.msra.mxu0 0.0
      %1527 = vmatprep.subr.mxu0 0.0
      %1528 = vmatpush1.msra.mxu0 0.0
      %1529 = vmatprep.subr.mxu0 0.0
      %1530 = vmatpush1.msra.mxu0 0.0
      %1531 = vmatprep.subr.mxu0 0.0
      %1532 = vmatpush1.msra.mxu0 0.0
      %1533 = vmatprep.subr.mxu0 0.0
      %1534 = vmatpush1.msra.mxu0 0.0
      %1535 = vmatprep.subr.mxu0 0.0
      %1536 = vmatpush1.msra.mxu0 0.0
      %1537 = vmatprep.subr.mxu0 0.0
      %1538 = vmatpush1.msra.mxu0 0.0
      %1539 = vmatprep.subr.mxu0 0.0
      %1540 = vmatpush1.msra.mxu0 0.0
      %1541 = vmatprep.subr.mxu0 0.0
      %1542 = vmatpush1.msra.mxu0 0.0
      %1543 = vmatprep.subr.mxu0 0.0
      %1544 = vmatpush1.msra.mxu0 0.0
      %1545 = vmatprep.subr.mxu0 0.0
      %1546 = vmatpush1.msra.mxu0 0.0
      %1547 = vmatprep.subr.mxu0 0.0
      %1548 = vmatpush1.msra.mxu0 0.0
      %1549 = vmatprep.subr.mxu0 0.0
      %1550 = vmatpush1.msra.mxu0 0.0
      %1551 = vmatprep.mubr.f32.mxu0 0.0
      %1552 = vmatmul.mubr.f32.gmra.mrb[0].mxu0 %v1485
      %v1553 = vpop.f32.mrb[0].mxu0
      %v1554 = vadd.f32 %v998, %v1553
      %v1555 = vpop.f32.mrb[0].mxu0
      %1556 = vdwg.mxu0
      %v1558 = vsel %vm1045, %v940, 0
      %1560 = vmatprep.subr.mxu0 0.0
      %1561 = vmatpush1.msra.mxu0 %v915
      %1562 = vmatprep.subr.mxu0 0.0
      %1563 = vmatpush1.msra.mxu0 %v916
      %1564 = vmatprep.subr.mxu0 0.0
      %1565 = vmatpush1.msra.mxu0 0.0
      %1566 = vmatprep.subr.mxu0 0.0
      %1567 = vmatpush1.msra.mxu0 0.0
      %1568 = vmatprep.subr.mxu0 0.0
      %1569 = vmatpush1.msra.mxu0 0.0
      %1570 = vmatprep.subr.mxu0 0.0
      %1571 = vmatpush1.msra.mxu0 0.0
      %1572 = vmatprep.subr.mxu0 0.0
      %1573 = vmatpush1.msra.mxu0 0.0
      %1574 = vmatprep.subr.mxu0 0.0
      %1575 = vmatpush1.msra.mxu0 0.0
      %1576 = vmatprep.subr.mxu0 0.0
      %1577 = vmatpush1.msra.mxu0 0.0
      %1578 = vmatprep.subr.mxu0 0.0
      %1579 = vmatpush1.msra.mxu0 0.0
      %1580 = vmatprep.subr.mxu0 0.0
      %1581 = vmatpush1.msra.mxu0 0.0
      %1582 = vmatprep.subr.mxu0 0.0
      %1583 = vmatpush1.msra.mxu0 0.0
      %1584 = vmatprep.subr.mxu0 0.0
      %1585 = vmatpush1.msra.mxu0 0.0
      %1586 = vmatprep.subr.mxu0 0.0
      %1587 = vmatpush1.msra.mxu0 0.0
      %1588 = vmatprep.subr.mxu0 0.0
      %1589 = vmatpush1.msra.mxu0 0.0
      %1590 = vmatprep.subr.mxu0 0.0
      %1591 = vmatpush1.msra.mxu0 0.0
      %1592 = vmatprep.subr.mxu0 0.0
      %1593 = vmatpush1.msra.mxu0 0.0
      %1594 = vmatprep.subr.mxu0 0.0
      %1595 = vmatpush1.msra.mxu0 0.0
      %1596 = vmatprep.subr.mxu0 0.0
      %1597 = vmatpush1.msra.mxu0 0.0
      %1598 = vmatprep.subr.mxu0 0.0
      %1599 = vmatpush1.msra.mxu0 0.0
      %1600 = vmatprep.subr.mxu0 0.0
      %1601 = vmatpush1.msra.mxu0 0.0
      %1602 = vmatprep.subr.mxu0 0.0
      %1603 = vmatpush1.msra.mxu0 0.0
      %1604 = vmatprep.subr.mxu0 0.0
      %1605 = vmatpush1.msra.mxu0 0.0
      %1606 = vmatprep.subr.mxu0 0.0
      %1607 = vmatpush1.msra.mxu0 0.0
      %1608 = vmatprep.subr.mxu0 0.0
      %1609 = vmatpush1.msra.mxu0 0.0
      %1610 = vmatprep.subr.mxu0 0.0
      %1611 = vmatpush1.msra.mxu0 0.0
      %1612 = vmatprep.subr.mxu0 0.0
      %1613 = vmatpush1.msra.mxu0 0.0
      %1614 = vmatprep.subr.mxu0 0.0
      %1615 = vmatpush1.msra.mxu0 0.0
      %1616 = vmatprep.subr.mxu0 0.0
      %1617 = vmatpush1.msra.mxu0 0.0
      %1618 = vmatprep.subr.mxu0 0.0
      %1619 = vmatpush1.msra.mxu0 0.0
      %1620 = vmatprep.subr.mxu0 0.0
      %1621 = vmatpush1.msra.mxu0 0.0
      %1622 = vmatprep.subr.mxu0 0.0
      %1623 = vmatpush1.msra.mxu0 0.0
      %1624 = vmatprep.mubr.f32.mxu0 0.0
      %1625 = vmatmul.mubr.f32.gmra.mrb[0].mxu0 %v1558
      %v1626 = vpop.f32.mrb[0].mxu0
      %v1627 = vadd.f32 %v1003, %v1626
      %v1628 = vpop.f32.mrb[0].mxu0
      %1629 = vdwg.mxu0
      %v1631 = vsel %vm1045, %v941, 0
      %1633 = vmatprep.subr.mxu0 0.0
      %1634 = vmatpush1.msra.mxu0 %v917
      %1635 = vmatprep.subr.mxu0 0.0
      %1636 = vmatpush1.msra.mxu0 %v918
      %1637 = vmatprep.subr.mxu0 0.0
      %1638 = vmatpush1.msra.mxu0 0.0
      %1639 = vmatprep.subr.mxu0 0.0
      %1640 = vmatpush1.msra.mxu0 0.0
      %1641 = vmatprep.subr.mxu0 0.0
      %1642 = vmatpush1.msra.mxu0 0.0
      %1643 = vmatprep.subr.mxu0 0.0
      %1644 = vmatpush1.msra.mxu0 0.0
      %1645 = vmatprep.subr.mxu0 0.0
      %1646 = vmatpush1.msra.mxu0 0.0
      %1647 = vmatprep.subr.mxu0 0.0
      %1648 = vmatpush1.msra.mxu0 0.0
      %1649 = vmatprep.subr.mxu0 0.0
      %1650 = vmatpush1.msra.mxu0 0.0
      %1651 = vmatprep.subr.mxu0 0.0
      %1652 = vmatpush1.msra.mxu0 0.0
      %1653 = vmatprep.subr.mxu0 0.0
      %1654 = vmatpush1.msra.mxu0 0.0
      %1655 = vmatprep.subr.mxu0 0.0
      %1656 = vmatpush1.msra.mxu0 0.0
      %1657 = vmatprep.subr.mxu0 0.0
      %1658 = vmatpush1.msra.mxu0 0.0
      %1659 = vmatprep.subr.mxu0 0.0
      %1660 = vmatpush1.msra.mxu0 0.0
      %1661 = vmatprep.subr.mxu0 0.0
      %1662 = vmatpush1.msra.mxu0 0.0
      %1663 = vmatprep.subr.mxu0 0.0
      %1664 = vmatpush1.msra.mxu0 0.0
      %1665 = vmatprep.subr.mxu0 0.0
      %1666 = vmatpush1.msra.mxu0 0.0
      %1667 = vmatprep.subr.mxu0 0.0
      %1668 = vmatpush1.msra.mxu0 0.0
      %1669 = vmatprep.subr.mxu0 0.0
      %1670 = vmatpush1.msra.mxu0 0.0
      %1671 = vmatprep.subr.mxu0 0.0
      %1672 = vmatpush1.msra.mxu0 0.0
      %1673 = vmatprep.subr.mxu0 0.0
      %1674 = vmatpush1.msra.mxu0 0.0
      %1675 = vmatprep.subr.mxu0 0.0
      %1676 = vmatpush1.msra.mxu0 0.0
      %1677 = vmatprep.subr.mxu0 0.0
      %1678 = vmatpush1.msra.mxu0 0.0
      %1679 = vmatprep.subr.mxu0 0.0
      %1680 = vmatpush1.msra.mxu0 0.0
      %1681 = vmatprep.subr.mxu0 0.0
      %1682 = vmatpush1.msra.mxu0 0.0
      %1683 = vmatprep.subr.mxu0 0.0
      %1684 = vmatpush1.msra.mxu0 0.0
      %1685 = vmatprep.subr.mxu0 0.0
      %1686 = vmatpush1.msra.mxu0 0.0
      %1687 = vmatprep.subr.mxu0 0.0
      %1688 = vmatpush1.msra.mxu0 0.0
      %1689 = vmatprep.subr.mxu0 0.0
      %1690 = vmatpush1.msra.mxu0 0.0
      %1691 = vmatprep.subr.mxu0 0.0
      %1692 = vmatpush1.msra.mxu0 0.0
      %1693 = vmatprep.subr.mxu0 0.0
      %1694 = vmatpush1.msra.mxu0 0.0
      %1695 = vmatprep.subr.mxu0 0.0
      %1696 = vmatpush1.msra.mxu0 0.0
      %1697 = vmatprep.mubr.f32.mxu0 0.0
      %1698 = vmatmul.mubr.f32.gmra.mrb[0].mxu0 %v1631
      %v1699 = vpop.f32.mrb[0].mxu0
      %v1700 = vadd.f32 %v1008, %v1699
      %v1701 = vpop.f32.mrb[0].mxu0
      %1702 = vdwg.mxu0
      %v1704 = vsel %vm1045, %v942, 0
      %1706 = vmatprep.subr.mxu0 0.0
      %1707 = vmatpush1.msra.mxu0 %v919
      %1708 = vmatprep.subr.mxu0 0.0
      %1709 = vmatpush1.msra.mxu0 %v920
      %1710 = vmatprep.subr.mxu0 0.0
      %1711 = vmatpush1.msra.mxu0 0.0
      %1712 = vmatprep.subr.mxu0 0.0
      %1713 = vmatpush1.msra.mxu0 0.0
      %1714 = vmatprep.subr.mxu0 0.0
      %1715 = vmatpush1.msra.mxu0 0.0
      %1716 = vmatprep.subr.mxu0 0.0
      %1717 = vmatpush1.msra.mxu0 0.0
      %1718 = vmatprep.subr.mxu0 0.0
      %1719 = vmatpush1.msra.mxu0 0.0
      %1720 = vmatprep.subr.mxu0 0.0
      %1721 = vmatpush1.msra.mxu0 0.0
      %1722 = vmatprep.subr.mxu0 0.0
      %1723 = vmatpush1.msra.mxu0 0.0
      %1724 = vmatprep.subr.mxu0 0.0
      %1725 = vmatpush1.msra.mxu0 0.0
      %1726 = vmatprep.subr.mxu0 0.0
      %1727 = vmatpush1.msra.mxu0 0.0
      %1728 = vmatprep.subr.mxu0 0.0
      %1729 = vmatpush1.msra.mxu0 0.0
      %1730 = vmatprep.subr.mxu0 0.0
      %1731 = vmatpush1.msra.mxu0 0.0
      %1732 = vmatprep.subr.mxu0 0.0
      %1733 = vmatpush1.msra.mxu0 0.0
      %1734 = vmatprep.subr.mxu0 0.0
      %1735 = vmatpush1.msra.mxu0 0.0
      %1736 = vmatprep.subr.mxu0 0.0
      %1737 = vmatpush1.msra.mxu0 0.0
      %1738 = vmatprep.subr.mxu0 0.0
      %1739 = vmatpush1.msra.mxu0 0.0
      %1740 = vmatprep.subr.mxu0 0.0
      %1741 = vmatpush1.msra.mxu0 0.0
      %1742 = vmatprep.subr.mxu0 0.0
      %1743 = vmatpush1.msra.mxu0 0.0
      %1744 = vmatprep.subr.mxu0 0.0
      %1745 = vmatpush1.msra.mxu0 0.0
      %1746 = vmatprep.subr.mxu0 0.0
      %1747 = vmatpush1.msra.mxu0 0.0
      %1748 = vmatprep.subr.mxu0 0.0
      %1749 = vmatpush1.msra.mxu0 0.0
      %1750 = vmatprep.subr.mxu0 0.0
      %1751 = vmatpush1.msra.mxu0 0.0
      %1752 = vmatprep.subr.mxu0 0.0
      %1753 = vmatpush1.msra.mxu0 0.0
      %1754 = vmatprep.subr.mxu0 0.0
      %1755 = vmatpush1.msra.mxu0 0.0
      %1756 = vmatprep.subr.mxu0 0.0
      %1757 = vmatpush1.msra.mxu0 0.0
      %1758 = vmatprep.subr.mxu0 0.0
      %1759 = vmatpush1.msra.mxu0 0.0
      %1760 = vmatprep.subr.mxu0 0.0
      %1761 = vmatpush1.msra.mxu0 0.0
      %1762 = vmatprep.subr.mxu0 0.0
      %1763 = vmatpush1.msra.mxu0 0.0
      %1764 = vmatprep.subr.mxu0 0.0
      %1765 = vmatpush1.msra.mxu0 0.0
      %1766 = vmatprep.subr.mxu0 0.0
      %1767 = vmatpush1.msra.mxu0 0.0
      %1768 = vmatprep.subr.mxu0 0.0
      %1769 = vmatpush1.msra.mxu0 0.0
      %1770 = vmatprep.mubr.f32.mxu0 0.0
      %1771 = vmatmul.mubr.f32.gmra.mrb[0].mxu0 %v1704
      %v1772 = vpop.f32.mrb[0].mxu0
      %v1773 = vadd.f32 %v1013, %v1772
      %v1774 = vpop.f32.mrb[0].mxu0
      %1775 = vdwg.mxu0
      %v1777 = vsel %vm1045, %v943, 0
      %1779 = vmatprep.subr.mxu0 0.0
      %1780 = vmatpush1.msra.mxu0 %v921
      %1781 = vmatprep.subr.mxu0 0.0
      %1782 = vmatpush1.msra.mxu0 %v922
      %1783 = vmatprep.subr.mxu0 0.0
      %1784 = vmatpush1.msra.mxu0 0.0
      %1785 = vmatprep.subr.mxu0 0.0
      %1786 = vmatpush1.msra.mxu0 0.0
      %1787 = vmatprep.subr.mxu0 0.0
      %1788 = vmatpush1.msra.mxu0 0.0
      %1789 = vmatprep.subr.mxu0 0.0
      %1790 = vmatpush1.msra.mxu0 0.0
      %1791 = vmatprep.subr.mxu0 0.0
      %1792 = vmatpush1.msra.mxu0 0.0
      %1793 = vmatprep.subr.mxu0 0.0
      %1794 = vmatpush1.msra.mxu0 0.0
      %1795 = vmatprep.subr.mxu0 0.0
      %1796 = vmatpush1.msra.mxu0 0.0
      %1797 = vmatprep.subr.mxu0 0.0
      %1798 = vmatpush1.msra.mxu0 0.0
      %1799 = vmatprep.subr.mxu0 0.0
      %1800 = vmatpush1.msra.mxu0 0.0
      %1801 = vmatprep.subr.mxu0 0.0
      %1802 = vmatpush1.msra.mxu0 0.0
      %1803 = vmatprep.subr.mxu0 0.0
      %1804 = vmatpush1.msra.mxu0 0.0
      %1805 = vmatprep.subr.mxu0 0.0
      %1806 = vmatpush1.msra.mxu0 0.0
      %1807 = vmatprep.subr.mxu0 0.0
      %1808 = vmatpush1.msra.mxu0 0.0
      %1809 = vmatprep.subr.mxu0 0.0
      %1810 = vmatpush1.msra.mxu0 0.0
      %1811 = vmatprep.subr.mxu0 0.0
      %1812 = vmatpush1.msra.mxu0 0.0
      %1813 = vmatprep.subr.mxu0 0.0
      %1814 = vmatpush1.msra.mxu0 0.0
      %1815 = vmatprep.subr.mxu0 0.0
      %1816 = vmatpush1.msra.mxu0 0.0
      %1817 = vmatprep.subr.mxu0 0.0
      %1818 = vmatpush1.msra.mxu0 0.0
      %1819 = vmatprep.subr.mxu0 0.0
      %1820 = vmatpush1.msra.mxu0 0.0
      %1821 = vmatprep.subr.mxu0 0.0
      %1822 = vmatpush1.msra.mxu0 0.0
      %1823 = vmatprep.subr.mxu0 0.0
      %1824 = vmatpush1.msra.mxu0 0.0
      %1825 = vmatprep.subr.mxu0 0.0
      %1826 = vmatpush1.msra.mxu0 0.0
      %1827 = vmatprep.subr.mxu0 0.0
      %1828 = vmatpush1.msra.mxu0 0.0
      %1829 = vmatprep.subr.mxu0 0.0
      %1830 = vmatpush1.msra.mxu0 0.0
      %1831 = vmatprep.subr.mxu0 0.0
      %1832 = vmatpush1.msra.mxu0 0.0
      %1833 = vmatprep.subr.mxu0 0.0
      %1834 = vmatpush1.msra.mxu0 0.0
      %1835 = vmatprep.subr.mxu0 0.0
      %1836 = vmatpush1.msra.mxu0 0.0
      %1837 = vmatprep.subr.mxu0 0.0
      %1838 = vmatpush1.msra.mxu0 0.0
      %1839 = vmatprep.subr.mxu0 0.0
      %1840 = vmatpush1.msra.mxu0 0.0
      %1841 = vmatprep.subr.mxu0 0.0
      %1842 = vmatpush1.msra.mxu0 0.0
      %1843 = vmatprep.mubr.f32.mxu0 0.0
      %1844 = vmatmul.mubr.f32.gmra.mrb[0].mxu0 %v1777
      %v1845 = vpop.f32.mrb[0].mxu0
      %v1846 = vadd.f32 %v1018, %v1845
      %v1847 = vpop.f32.mrb[0].mxu0
      %1848 = vdwg.mxu0
      %v1850 = vsel %vm1045, %v944, 0
      %1852 = vmatprep.subr.mxu0 0.0
      %1853 = vmatpush1.msra.mxu0 %v923
      %1854 = vmatprep.subr.mxu0 0.0
      %1855 = vmatpush1.msra.mxu0 %v924
      %1856 = vmatprep.subr.mxu0 0.0
      %1857 = vmatpush1.msra.mxu0 0.0
      %1858 = vmatprep.subr.mxu0 0.0
      %1859 = vmatpush1.msra.mxu0 0.0
      %1860 = vmatprep.subr.mxu0 0.0
      %1861 = vmatpush1.msra.mxu0 0.0
      %1862 = vmatprep.subr.mxu0 0.0
      %1863 = vmatpush1.msra.mxu0 0.0
      %1864 = vmatprep.subr.mxu0 0.0
      %1865 = vmatpush1.msra.mxu0 0.0
      %1866 = vmatprep.subr.mxu0 0.0
      %1867 = vmatpush1.msra.mxu0 0.0
      %1868 = vmatprep.subr.mxu0 0.0
      %1869 = vmatpush1.msra.mxu0 0.0
      %1870 = vmatprep.subr.mxu0 0.0
      %1871 = vmatpush1.msra.mxu0 0.0
      %1872 = vmatprep.subr.mxu0 0.0
      %1873 = vmatpush1.msra.mxu0 0.0
      %1874 = vmatprep.subr.mxu0 0.0
      %1875 = vmatpush1.msra.mxu0 0.0
      %1876 = vmatprep.subr.mxu0 0.0
      %1877 = vmatpush1.msra.mxu0 0.0
      %1878 = vmatprep.subr.mxu0 0.0
      %1879 = vmatpush1.msra.mxu0 0.0
      %1880 = vmatprep.subr.mxu0 0.0
      %1881 = vmatpush1.msra.mxu0 0.0
      %1882 = vmatprep.subr.mxu0 0.0
      %1883 = vmatpush1.msra.mxu0 0.0
      %1884 = vmatprep.subr.mxu0 0.0
      %1885 = vmatpush1.msra.mxu0 0.0
      %1886 = vmatprep.subr.mxu0 0.0
      %1887 = vmatpush1.msra.mxu0 0.0
      %1888 = vmatprep.subr.mxu0 0.0
      %1889 = vmatpush1.msra.mxu0 0.0
      %1890 = vmatprep.subr.mxu0 0.0
      %1891 = vmatpush1.msra.mxu0 0.0
      %1892 = vmatprep.subr.mxu0 0.0
      %1893 = vmatpush1.msra.mxu0 0.0
      %1894 = vmatprep.subr.mxu0 0.0
      %1895 = vmatpush1.msra.mxu0 0.0
      %1896 = vmatprep.subr.mxu0 0.0
      %1897 = vmatpush1.msra.mxu0 0.0
      %1898 = vmatprep.subr.mxu0 0.0
      %1899 = vmatpush1.msra.mxu0 0.0
      %1900 = vmatprep.subr.mxu0 0.0
      %1901 = vmatpush1.msra.mxu0 0.0
      %1902 = vmatprep.subr.mxu0 0.0
      %1903 = vmatpush1.msra.mxu0 0.0
      %1904 = vmatprep.subr.mxu0 0.0
      %1905 = vmatpush1.msra.mxu0 0.0
      %1906 = vmatprep.subr.mxu0 0.0
      %1907 = vmatpush1.msra.mxu0 0.0
      %1908 = vmatprep.subr.mxu0 0.0
      %1909 = vmatpush1.msra.mxu0 0.0
      %1910 = vmatprep.subr.mxu0 0.0
      %1911 = vmatpush1.msra.mxu0 0.0
      %1912 = vmatprep.subr.mxu0 0.0
      %1913 = vmatpush1.msra.mxu0 0.0
      %1914 = vmatprep.subr.mxu0 0.0
      %1915 = vmatpush1.msra.mxu0 0.0
      %1916 = vmatprep.mubr.f32.mxu0 0.0
      %1917 = vmatmul.mubr.f32.gmra.mrb[0].mxu0 %v1850
      %v1918 = vpop.f32.mrb[0].mxu0
      %v1919 = vadd.f32 %v1023, %v1918
      %v1920 = vpop.f32.mrb[0].mxu0
      %1921 = vdwg.mxu0
      %v1923 = vsel %vm1045, %v945, 0
      %1925 = vmatprep.subr.mxu0 0.0
      %1926 = vmatpush1.msra.mxu0 %v925
      %1927 = vmatprep.subr.mxu0 0.0
      %1928 = vmatpush1.msra.mxu0 %v926
      %1929 = vmatprep.subr.mxu0 0.0
      %1930 = vmatpush1.msra.mxu0 0.0
      %1931 = vmatprep.subr.mxu0 0.0
      %1932 = vmatpush1.msra.mxu0 0.0
      %1933 = vmatprep.subr.mxu0 0.0
      %1934 = vmatpush1.msra.mxu0 0.0
      %1935 = vmatprep.subr.mxu0 0.0
      %1936 = vmatpush1.msra.mxu0 0.0
      %1937 = vmatprep.subr.mxu0 0.0
      %1938 = vmatpush1.msra.mxu0 0.0
      %1939 = vmatprep.subr.mxu0 0.0
      %1940 = vmatpush1.msra.mxu0 0.0
      %1941 = vmatprep.subr.mxu0 0.0
      %1942 = vmatpush1.msra.mxu0 0.0
      %1943 = vmatprep.subr.mxu0 0.0
      %1944 = vmatpush1.msra.mxu0 0.0
      %1945 = vmatprep.subr.mxu0 0.0
      %1946 = vmatpush1.msra.mxu0 0.0
      %1947 = vmatprep.subr.mxu0 0.0
      %1948 = vmatpush1.msra.mxu0 0.0
      %1949 = vmatprep.subr.mxu0 0.0
      %1950 = vmatpush1.msra.mxu0 0.0
      %1951 = vmatprep.subr.mxu0 0.0
      %1952 = vmatpush1.msra.mxu0 0.0
      %1953 = vmatprep.subr.mxu0 0.0
      %1954 = vmatpush1.msra.mxu0 0.0
      %1955 = vmatprep.subr.mxu0 0.0
      %1956 = vmatpush1.msra.mxu0 0.0
      %1957 = vmatprep.subr.mxu0 0.0
      %1958 = vmatpush1.msra.mxu0 0.0
      %1959 = vmatprep.subr.mxu0 0.0
      %1960 = vmatpush1.msra.mxu0 0.0
      %1961 = vmatprep.subr.mxu0 0.0
      %1962 = vmatpush1.msra.mxu0 0.0
      %1963 = vmatprep.subr.mxu0 0.0
      %1964 = vmatpush1.msra.mxu0 0.0
      %1965 = vmatprep.subr.mxu0 0.0
      %1966 = vmatpush1.msra.mxu0 0.0
      %1967 = vmatprep.subr.mxu0 0.0
      %1968 = vmatpush1.msra.mxu0 0.0
      %1969 = vmatprep.subr.mxu0 0.0
      %1970 = vmatpush1.msra.mxu0 0.0
      %1971 = vmatprep.subr.mxu0 0.0
      %1972 = vmatpush1.msra.mxu0 0.0
      %1973 = vmatprep.subr.mxu0 0.0
      %1974 = vmatpush1.msra.mxu0 0.0
      %1975 = vmatprep.subr.mxu0 0.0
      %1976 = vmatpush1.msra.mxu0 0.0
      %1977 = vmatprep.subr.mxu0 0.0
      %1978 = vmatpush1.msra.mxu0 0.0
      %1979 = vmatprep.subr.mxu0 0.0
      %1980 = vmatpush1.msra.mxu0 0.0
      %1981 = vmatprep.subr.mxu0 0.0
      %1982 = vmatpush1.msra.mxu0 0.0
      %1983 = vmatprep.subr.mxu0 0.0
      %1984 = vmatpush1.msra.mxu0 0.0
      %1985 = vmatprep.subr.mxu0 0.0
      %1986 = vmatpush1.msra.mxu0 0.0
      %1987 = vmatprep.subr.mxu0 0.0
      %1988 = vmatpush1.msra.mxu0 0.0
      %1989 = vmatprep.mubr.f32.mxu0 0.0
      %1990 = vmatmul.mubr.f32.gmra.mrb[0].mxu0 %v1923
      %v1991 = vpop.f32.mrb[0].mxu0
      %v1992 = vadd.f32 %v1028, %v1991
      %v1993 = vpop.f32.mrb[0].mxu0
      %1994 = vdwg.mxu0
      %v1996 = vsel %vm1045, %v946, 0
      %1998 = vmatprep.subr.mxu0 0.0
      %1999 = vmatpush1.msra.mxu0 %v927
      %2000 = vmatprep.subr.mxu0 0.0
      %2001 = vmatpush1.msra.mxu0 %v928
      %2002 = vmatprep.subr.mxu0 0.0
      %2003 = vmatpush1.msra.mxu0 0.0
      %2004 = vmatprep.subr.mxu0 0.0
      %2005 = vmatpush1.msra.mxu0 0.0
      %2006 = vmatprep.subr.mxu0 0.0
      %2007 = vmatpush1.msra.mxu0 0.0
      %2008 = vmatprep.subr.mxu0 0.0
      %2009 = vmatpush1.msra.mxu0 0.0
      %2010 = vmatprep.subr.mxu0 0.0
      %2011 = vmatpush1.msra.mxu0 0.0
      %2012 = vmatprep.subr.mxu0 0.0
      %2013 = vmatpush1.msra.mxu0 0.0
      %2014 = vmatprep.subr.mxu0 0.0
      %2015 = vmatpush1.msra.mxu0 0.0
      %2016 = vmatprep.subr.mxu0 0.0
      %2017 = vmatpush1.msra.mxu0 0.0
      %2018 = vmatprep.subr.mxu0 0.0
      %2019 = vmatpush1.msra.mxu0 0.0
      %2020 = vmatprep.subr.mxu0 0.0
      %2021 = vmatpush1.msra.mxu0 0.0
      %2022 = vmatprep.subr.mxu0 0.0
      %2023 = vmatpush1.msra.mxu0 0.0
      %2024 = vmatprep.subr.mxu0 0.0
      %2025 = vmatpush1.msra.mxu0 0.0
      %2026 = vmatprep.subr.mxu0 0.0
      %2027 = vmatpush1.msra.mxu0 0.0
      %2028 = vmatprep.subr.mxu0 0.0
      %2029 = vmatpush1.msra.mxu0 0.0
      %2030 = vmatprep.subr.mxu0 0.0
      %2031 = vmatpush1.msra.mxu0 0.0
      %2032 = vmatprep.subr.mxu0 0.0
      %2033 = vmatpush1.msra.mxu0 0.0
      %2034 = vmatprep.subr.mxu0 0.0
      %2035 = vmatpush1.msra.mxu0 0.0
      %2036 = vmatprep.subr.mxu0 0.0
      %2037 = vmatpush1.msra.mxu0 0.0
      %2038 = vmatprep.subr.mxu0 0.0
      %2039 = vmatpush1.msra.mxu0 0.0
      %2040 = vmatprep.subr.mxu0 0.0
      %2041 = vmatpush1.msra.mxu0 0.0
      %2042 = vmatprep.subr.mxu0 0.0
      %2043 = vmatpush1.msra.mxu0 0.0
      %2044 = vmatprep.subr.mxu0 0.0
      %2045 = vmatpush1.msra.mxu0 0.0
      %2046 = vmatprep.subr.mxu0 0.0
      %2047 = vmatpush1.msra.mxu0 0.0
      %2048 = vmatprep.subr.mxu0 0.0
      %2049 = vmatpush1.msra.mxu0 0.0
      %2050 = vmatprep.subr.mxu0 0.0
      %2051 = vmatpush1.msra.mxu0 0.0
      %2052 = vmatprep.subr.mxu0 0.0
      %2053 = vmatpush1.msra.mxu0 0.0
      %2054 = vmatprep.subr.mxu0 0.0
      %2055 = vmatpush1.msra.mxu0 0.0
      %2056 = vmatprep.subr.mxu0 0.0
      %2057 = vmatpush1.msra.mxu0 0.0
      %2058 = vmatprep.subr.mxu0 0.0
      %2059 = vmatpush1.msra.mxu0 0.0
      %2060 = vmatprep.subr.mxu0 0.0
      %2061 = vmatpush1.msra.mxu0 0.0
      %2062 = vmatprep.mubr.f32.mxu0 0.0
      %2063 = vmatmul.mubr.f32.gmra.mrb[0].mxu0 %v1996
      %v2064 = vpop.f32.mrb[0].mxu0
      %v2065 = vadd.f32 %v1033, %v2064
      %v2066 = vpop.f32.mrb[0].mxu0
      %2067 = vdwg.mxu0
      %v2069 = vsel %vm1045, %v947, 0
      %2071 = vmatprep.subr.mxu0 0.0
      %2072 = vmatpush1.msra.mxu0 %v929
      %2073 = vmatprep.subr.mxu0 0.0
      %2074 = vmatpush1.msra.mxu0 %v930
      %2075 = vmatprep.subr.mxu0 0.0
      %2076 = vmatpush1.msra.mxu0 0.0
      %2077 = vmatprep.subr.mxu0 0.0
      %2078 = vmatpush1.msra.mxu0 0.0
      %2079 = vmatprep.subr.mxu0 0.0
      %2080 = vmatpush1.msra.mxu0 0.0
      %2081 = vmatprep.subr.mxu0 0.0
      %2082 = vmatpush1.msra.mxu0 0.0
      %2083 = vmatprep.subr.mxu0 0.0
      %2084 = vmatpush1.msra.mxu0 0.0
      %2085 = vmatprep.subr.mxu0 0.0
      %2086 = vmatpush1.msra.mxu0 0.0
      %2087 = vmatprep.subr.mxu0 0.0
      %2088 = vmatpush1.msra.mxu0 0.0
      %2089 = vmatprep.subr.mxu0 0.0
      %2090 = vmatpush1.msra.mxu0 0.0
      %2091 = vmatprep.subr.mxu0 0.0
      %2092 = vmatpush1.msra.mxu0 0.0
      %2093 = vmatprep.subr.mxu0 0.0
      %2094 = vmatpush1.msra.mxu0 0.0
      %2095 = vmatprep.subr.mxu0 0.0
      %2096 = vmatpush1.msra.mxu0 0.0
      %2097 = vmatprep.subr.mxu0 0.0
      %2098 = vmatpush1.msra.mxu0 0.0
      %2099 = vmatprep.subr.mxu0 0.0
      %2100 = vmatpush1.msra.mxu0 0.0
      %2101 = vmatprep.subr.mxu0 0.0
      %2102 = vmatpush1.msra.mxu0 0.0
      %2103 = vmatprep.subr.mxu0 0.0
      %2104 = vmatpush1.msra.mxu0 0.0
      %2105 = vmatprep.subr.mxu0 0.0
      %2106 = vmatpush1.msra.mxu0 0.0
      %2107 = vmatprep.subr.mxu0 0.0
      %2108 = vmatpush1.msra.mxu0 0.0
      %2109 = vmatprep.subr.mxu0 0.0
      %2110 = vmatpush1.msra.mxu0 0.0
      %2111 = vmatprep.subr.mxu0 0.0
      %2112 = vmatpush1.msra.mxu0 0.0
      %2113 = vmatprep.subr.mxu0 0.0
      %2114 = vmatpush1.msra.mxu0 0.0
      %2115 = vmatprep.subr.mxu0 0.0
      %2116 = vmatpush1.msra.mxu0 0.0
      %2117 = vmatprep.subr.mxu0 0.0
      %2118 = vmatpush1.msra.mxu0 0.0
      %2119 = vmatprep.subr.mxu0 0.0
      %2120 = vmatpush1.msra.mxu0 0.0
      %2121 = vmatprep.subr.mxu0 0.0
      %2122 = vmatpush1.msra.mxu0 0.0
      %2123 = vmatprep.subr.mxu0 0.0
      %2124 = vmatpush1.msra.mxu0 0.0
      %2125 = vmatprep.subr.mxu0 0.0
      %2126 = vmatpush1.msra.mxu0 0.0
      %2127 = vmatprep.subr.mxu0 0.0
      %2128 = vmatpush1.msra.mxu0 0.0
      %2129 = vmatprep.subr.mxu0 0.0
      %2130 = vmatpush1.msra.mxu0 0.0
      %2131 = vmatprep.subr.mxu0 0.0
      %2132 = vmatpush1.msra.mxu0 0.0
      %2133 = vmatprep.subr.mxu0 0.0
      %2134 = vmatpush1.msra.mxu0 0.0
      %2135 = vmatprep.mubr.f32.mxu0 0.0
      %2136 = vmatmul.mubr.f32.gmra.mrb[0].mxu0 %v2069
      %v2137 = vpop.f32.mrb[0].mxu0
      %v2138 = vadd.f32 %v1038, %v2137
      %v2139 = vpop.f32.mrb[0].mxu0
      %2140 = vdwg.mxu0
      %v2142 = vsel %vm1045, %v948, 0
      %2144 = vmatprep.subr.mxu0 0.0
      %2145 = vmatpush1.msra.mxu0 %v931
      %2146 = vmatprep.subr.mxu0 0.0
      %2147 = vmatpush1.msra.mxu0 %v932
      %2148 = vmatprep.subr.mxu0 0.0
      %2149 = vmatpush1.msra.mxu0 0.0
      %2150 = vmatprep.subr.mxu0 0.0
      %2151 = vmatpush1.msra.mxu0 0.0
      %2152 = vmatprep.subr.mxu0 0.0
      %2153 = vmatpush1.msra.mxu0 0.0
      %2154 = vmatprep.subr.mxu0 0.0
      %2155 = vmatpush1.msra.mxu0 0.0
      %2156 = vmatprep.subr.mxu0 0.0
      %2157 = vmatpush1.msra.mxu0 0.0
      %2158 = vmatprep.subr.mxu0 0.0
      %2159 = vmatpush1.msra.mxu0 0.0
      %2160 = vmatprep.subr.mxu0 0.0
      %2161 = vmatpush1.msra.mxu0 0.0
      %2162 = vmatprep.subr.mxu0 0.0
      %2163 = vmatpush1.msra.mxu0 0.0
      %2164 = vmatprep.subr.mxu0 0.0
      %2165 = vmatpush1.msra.mxu0 0.0
      %2166 = vmatprep.subr.mxu0 0.0
      %2167 = vmatpush1.msra.mxu0 0.0
      %2168 = vmatprep.subr.mxu0 0.0
      %2169 = vmatpush1.msra.mxu0 0.0
      %2170 = vmatprep.subr.mxu0 0.0
      %2171 = vmatpush1.msra.mxu0 0.0
      %2172 = vmatprep.subr.mxu0 0.0
      %2173 = vmatpush1.msra.mxu0 0.0
      %2174 = vmatprep.subr.mxu0 0.0
      %2175 = vmatpush1.msra.mxu0 0.0
      %2176 = vmatprep.subr.mxu0 0.0
      %2177 = vmatpush1.msra.mxu0 0.0
      %2178 = vmatprep.subr.mxu0 0.0
      %2179 = vmatpush1.msra.mxu0 0.0
      %2180 = vmatprep.subr.mxu0 0.0
      %2181 = vmatpush1.msra.mxu0 0.0
      %2182 = vmatprep.subr.mxu0 0.0
      %2183 = vmatpush1.msra.mxu0 0.0
      %2184 = vmatprep.subr.mxu0 0.0
      %2185 = vmatpush1.msra.mxu0 0.0
      %2186 = vmatprep.subr.mxu0 0.0
      %2187 = vmatpush1.msra.mxu0 0.0
      %2188 = vmatprep.subr.mxu0 0.0
      %2189 = vmatpush1.msra.mxu0 0.0
      %2190 = vmatprep.subr.mxu0 0.0
      %2191 = vmatpush1.msra.mxu0 0.0
      %2192 = vmatprep.subr.mxu0 0.0
      %2193 = vmatpush1.msra.mxu0 0.0
      %2194 = vmatprep.subr.mxu0 0.0
      %2195 = vmatpush1.msra.mxu0 0.0
      %2196 = vmatprep.subr.mxu0 0.0
      %2197 = vmatpush1.msra.mxu0 0.0
      %2198 = vmatprep.subr.mxu0 0.0
      %2199 = vmatpush1.msra.mxu0 0.0
      %2200 = vmatprep.subr.mxu0 0.0
      %2201 = vmatpush1.msra.mxu0 0.0
      %2202 = vmatprep.subr.mxu0 0.0
      %2203 = vmatpush1.msra.mxu0 0.0
      %2204 = vmatprep.subr.mxu0 0.0
      %2205 = vmatpush1.msra.mxu0 0.0
      %2206 = vmatprep.subr.mxu0 0.0
      %2207 = vmatpush1.msra.mxu0 0.0
      %2208 = vmatprep.mubr.f32.mxu0 0.0
      %2209 = vmatmul.mubr.f32.gmra.mrb[0].mxu0 %v2142
      %v2210 = vpop.f32.mrb[0].mxu0
      %v2211 = vadd.f32 %v1043, %v2210
      %v2212 = vpop.f32.mrb[0].mxu0
      %2213 = vdwg.mxu0
      %v2214 = vld [vmem:[%s1] sm:$0xf]
      %2216 = vset.pattern.permute.xlu0 0
      %2217 = vperm.xlu0 %2216, %v2214
      %v2218 = vpop.permute.xlu0 %2217
      %v2220 = vmul.f32 %v1116, %v2218
      %v2221 = vmul.f32 %v1189, %v2218
      %v2222 = vmul.f32 %v1262, %v2218
      %v2223 = vmul.f32 %v1335, %v2218
      %v2224 = vmul.f32 %v1408, %v2218
      %v2225 = vmul.f32 %v1481, %v2218
      %v2226 = vmul.f32 %v1554, %v2218
      %v2227 = vmul.f32 %v1627, %v2218
      %v2228 = vmul.f32 %v1700, %v2218
      %v2229 = vmul.f32 %v1773, %v2218
      %v2230 = vmul.f32 %v1846, %v2218
      %v2231 = vmul.f32 %v1919, %v2218
      %v2232 = vmul.f32 %v1992, %v2218
      %v2233 = vmul.f32 %v2065, %v2218
      %v2234 = vmul.f32 %v2138, %v2218
      %v2235 = vmul.f32 %v2211, %v2218
      %v2236 = vld [vmem:[%s2] sm:$0xf]
      %2238 = vset.pattern.permute.xlu0 0
      %2239 = vperm.xlu0 %2238, %v2236
      %v2240 = vpop.permute.xlu0 %2239
      %v2242 = vadd.f32 %v2220, %v2240
      %v2243 = vadd.f32 %v2221, %v2240
      %v2244 = vadd.f32 %v2222, %v2240
      %v2245 = vadd.f32 %v2223, %v2240
      %v2246 = vadd.f32 %v2224, %v2240
      %v2247 = vadd.f32 %v2225, %v2240
      %v2248 = vadd.f32 %v2226, %v2240
      %v2249 = vadd.f32 %v2227, %v2240
      %v2250 = vadd.f32 %v2228, %v2240
      %v2251 = vadd.f32 %v2229, %v2240
      %v2252 = vadd.f32 %v2230, %v2240
      %v2253 = vadd.f32 %v2231, %v2240
      %v2254 = vadd.f32 %v2232, %v2240
      %v2255 = vadd.f32 %v2233, %v2240
      %v2256 = vadd.f32 %v2234, %v2240
      %v2257 = vadd.f32 %v2235, %v2240
      %vm2258 = vcmask 27648
      %2259 = vst.msk [vmem:[%s352] sm:$0xf] %vm2258, %v2242
      %2260 = vst.msk [vmem:[%s352 + $0x4] sm:$0xf] %vm2258, %v2243
      %2261 = vst.msk [vmem:[%s352 + $0x8] sm:$0xf] %vm2258, %v2244
      %2262 = vst.msk [vmem:[%s352 + $0xc] sm:$0xf] %vm2258, %v2245
      %2263 = vst.msk [vmem:[%s352 + $0x10] sm:$0xf] %vm2258, %v2246
      %2264 = vst.msk [vmem:[%s352 + $0x14] sm:$0xf] %vm2258, %v2247
      %2265 = vst.msk [vmem:[%s352 + $0x18] sm:$0xf] %vm2258, %v2248
      %2266 = vst.msk [vmem:[%s352 + $0x1c] sm:$0xf] %vm2258, %v2249
      %2267 = vst.msk [vmem:[%s352 + $0x20] sm:$0xf] %vm2258, %v2250
      %2268 = vst.msk [vmem:[%s352 + $0x24] sm:$0xf] %vm2258, %v2251
      %2269 = vst.msk [vmem:[%s352 + $0x28] sm:$0xf] %vm2258, %v2252
      %2270 = vst.msk [vmem:[%s352 + $0x2c] sm:$0xf] %vm2258, %v2253
      %2271 = vst.msk [vmem:[%s352 + $0x30] sm:$0xf] %vm2258, %v2254
      %2272 = vst.msk [vmem:[%s352 + $0x34] sm:$0xf] %vm2258, %v2255
      %2273 = vst.msk [vmem:[%s352 + $0x38] sm:$0xf] %vm2258, %v2256
      %2274 = vst.msk [vmem:[%s352 + $0x3c] sm:$0xf] %vm2258, %v2257
      %s2275 = smul.u32 16, %s18
      %p2276 = scmp.lt.s32.totalorder %s2275, 31
      %s2277 = scalar_select %p2276, %s2275, 31
      %s2278 = smul.addr %s2277, 4
      %s2279 = scalar_lea.vmem %s7, %s2278
      // Predicated region
      $region49: #{tpu_custom_call.1} parent=47 // pred_check
        %p2280 = pneg %p203
      $region50: #{tpu_custom_call.1} parent=47 // pred_check_branch
        %2282 = sbr.rel (%p2280) target = $region52
      $region51: #{tpu_custom_call.1} parent=47 // pred_region
        %s2283 = smul.u32 16, %s18
      $region52: #{tpu_custom_call.1} parent=47 // pred_fallthru
        _
    $region48: #{tpu_custom_call.1} parent=5 // pred_fallthru
      _
    %p2284 = scmp.le.s32.totalorder 2, %s13
    // Predicated region
    $region53: #{tpu_custom_call.1} parent=5 // pred_check
      %p2285 = pneg %p2284
    $region54: #{tpu_custom_call.1} parent=5 // pred_check_branch
      %2287 = sbr.rel (%p2285) target = $region56
    $region55: #{tpu_custom_call.1} parent=5 // pred_region
      %s2288 = ssub.s32 %s13, 2
      // Predicated region
      $region57: #{tpu_custom_call.1} parent=55 // pred_check
        %p2289 = pneg %p209
      $region58: #{tpu_custom_call.1} parent=55 // pred_check_branch
        %2291 = sbr.rel (%p2289) target = $region60
      $region59: #{tpu_custom_call.1} parent=55 // pred_region
        %s2292 = smul.u32 16, %s19
        %p2293 = scmp.lt.s32.totalorder %s2292, 31
        %s2294 = scalar_select %p2293, %s2292, 31
        %s2295 = smul.addr %s2294, 4
        %s2296 = scalar_lea.vmem %s7, %s2295
      $region60: #{tpu_custom_call.1} parent=55 // pred_fallthru
        _
    $region56: #{tpu_custom_call.1} parent=5 // pred_fallthru
      _
  $region6: #{tpu_custom_call.1} parent=0 // loop_footer
    %s17 = sadd.s32 1, %s13
  $region7: #{tpu_custom_call.1} parent=0 // loop_footer_branch
    %12 = sbr.rel target = $region3
  $region8: #{tpu_custom_call.1} parent=0 // loop_exit
    _

</llo_original>
